<compile_context>
chip_gen: v5e
topology: v5e:2x2
jax: 0.10.0
libtpu: 0.0.40
codegen_flags: <defaults>
</compile_context>

<pallas_src>
import math
import functools

import jax
import jax.numpy as jnp
from jax.experimental import pallas as pl
from jax.experimental.pallas import tpu as pltpu


# ----------------------------- Pallas kernel -------------------------------

def _layernorm(x, g, b, eps=1e-5):
    mu = jnp.mean(x, axis=-1, keepdims=True)
    var = jnp.mean((x - mu) ** 2, axis=-1, keepdims=True)
    return (x - mu) * jax.lax.rsqrt(var + eps) * g + b


def gpt2_fused_kernel(tok_ref,                        # SMEM prefetch: (N*S,) i32
                      mask_ref, pe_ref, emb_ref,
                      ln1g_ref, ln1b_ref, ln2g_ref, ln2b_ref,
                      wo_ref, bo_ref, w1_ref, b1_ref, w2_ref, b2_ref,
                      wout_ref, bout_ref,
                      o_ref,
                      buf_ref,                        # VMEM scratch (N*S, E)
                      *, num_layers, heads, head_dim, inv_scale, seq_len):
    """Entire GPT2 forward (all batch rows folded together), one grid step."""
    NS, E = buf_ref.shape

    # ---- token-embedding row gather + batch-indexed positional encoding.
    # Token ids are SMEM scalars; emb table is (V, 1, E) so each lookup is a
    # dynamic leading-axis load. pe row index r // S is a static Python int
    # (faithful: PE is indexed by the batch index and broadcast over S).
    for r in range(NS):
        tok_idx = tok_ref[r]
        buf_ref[pl.ds(r, 1), :] = emb_ref[tok_idx] + pe_ref[r // seq_len]

    x = buf_ref[...]                                   # (NS, E)

    # ---- block-diagonal attention mask (True = masked), hoisted out of loops
    neg = mask_ref[...] == 0                           # (NS, NS) bool

    # ---- transformer blocks, statically unrolled over the layer axis
    for l in range(num_layers):
        xn = _layernorm(x, ln1g_ref[l], ln1b_ref[l])   # (NS, E)
        # fold 1/sqrt(E) into q only; k = v = xn stay unscaled (q = k = v in
        # the reference, which never applies the per-head q/k/v projections)
        q = xn * inv_scale

        for h in range(heads):
            lo = h * head_dim
            hi = lo + head_dim
            kv = xn[:, lo:hi]                          # (NS, D)  (k = v)
            # q_h @ kv^T without materializing the transpose
            energy = jax.lax.dot_general(
                q[:, lo:hi], kv, (((1,), (1,)), ((), ())),
                preferred_element_type=jnp.float32)    # (NS, NS)
            energy = jnp.where(neg, jnp.float32(-1e20), energy)
            m = jnp.max(energy, axis=-1, keepdims=True)
            p = jnp.exp(energy - m)
            attn = p * pl.reciprocal(jnp.sum(p, axis=-1, keepdims=True),
                                     approx=True)
            # head output written at a static lane offset (no lane concat)
            buf_ref[:, lo:hi] = jnp.dot(attn, kv,
                                        preferred_element_type=jnp.float32)

        attn_out = (jnp.dot(buf_ref[...], wo_ref[l],
                            preferred_element_type=jnp.float32) + bo_ref[l])

        x2 = attn_out + x                              # residual with raw x
        x2n = _layernorm(x2, ln2g_ref[l], ln2b_ref[l])
        h1 = jnp.maximum(
            jnp.dot(x2n, w1_ref[l], preferred_element_type=jnp.float32)
            + b1_ref[l], 0.0)
        ff = (jnp.dot(h1, w2_ref[l], preferred_element_type=jnp.float32)
              + b2_ref[l])
        x = ff + x2n                    # faithful: residual with normed x2

    # ---- final vocab projection, padded to 128 lanes -> full unmasked store
    o_ref[...] = (jnp.dot(x, wout_ref[...], preferred_element_type=jnp.float32)
                  + bout_ref[...])


# ------------------------------ Wrapper -------------------------------------

def gpt2_forward(tokens, mask, params, *, embed_size, heads, num_layers):
    N, S = tokens.shape
    E = embed_size
    V = params["tok_emb"].shape[0]
    NS = N * S
    head_dim = E // heads
    inv_scale = 1.0 / math.sqrt(E)
    V_PAD = ((V + 127) // 128) * 128          # lane-dense output width

    s = params["stacked"]

    # ---- layout plumbing (tiny, one-shot) ----------------------------------
    tok_flat = tokens.reshape(NS).astype(jnp.int32)     # -> SMEM prefetch
    emb3 = params["tok_emb"].reshape(V, 1, E)           # row-gather layout
    pe_n = params["pe"][:N]                             # (N, 1, E) batch-indexed
    # block-diagonal mask: batch folded into rows; cross-batch entries masked
    mask_full = jnp.kron(jnp.eye(N, dtype=mask.dtype), mask)       # (NS, NS)
    # pad the vocab projection to a multiple of 128 lanes
    w_out_p = jnp.pad(params["w_out"], ((0, 0), (0, V_PAD - V)))
    b_out_p = jnp.pad(params["b_out"], ((0, 0), (0, V_PAD - V)))

    kern = functools.partial(gpt2_fused_kernel, num_layers=num_layers,
                             heads=heads, head_dim=head_dim,
                             inv_scale=inv_scale, seq_len=S)

    def full_spec(a):
        zeros = (0,) * a.ndim
        return pl.BlockSpec(a.shape, lambda i, tok, z=zeros: z)

    inputs = (mask_full, pe_n, emb3,
              s["ln1_g"], s["ln1_b"], s["ln2_g"], s["ln2_b"],
              s["wo"], s["bo"], s["w1"], s["b1"], s["w2"], s["b2"],
              w_out_p, b_out_p)

    out = pl.pallas_call(
        kern,
        out_shape=jax.ShapeDtypeStruct((NS, V_PAD), jnp.float32),
        grid_spec=pltpu.PrefetchScalarGridSpec(
            num_scalar_prefetch=1,
            grid=(1,),                        # batch folded into rows: 1 step
            in_specs=[full_spec(a) for a in inputs],
            out_specs=pl.BlockSpec((NS, V_PAD), lambda i, tok: (0, 0)),
            scratch_shapes=[pltpu.VMEM((NS, E), jnp.float32)]),
        compiler_params=pltpu.CompilerParams(
            dimension_semantics=("arbitrary",),
            # actual footprint (padded weights + activations, double-buffered)
            # is ~1 MiB at these shapes; 8 MiB leaves ample headroom.
            vmem_limit_bytes=8 * 1024 * 1024),
    )(tok_flat, *inputs)

    return out[:, :V].reshape(N, S, V)


# ------------------------- Pure-JAX reference -------------------------------

def gpt2_reference(tokens, mask, params, *, embed_size, heads, num_layers):
    E = embed_size
    D = E // heads
    N, S = tokens.shape
    x = jnp.take(params["tok_emb"], tokens, axis=0) + params["pe"][:N]
    s = params["stacked"]
    for l in range(num_layers):
        xn = _layernorm(x, s["ln1_g"][l, 0], s["ln1_b"][l, 0])
        xh = xn.reshape(N, S, heads, D)
        energy = jnp.einsum('nqhd,nkhd->nhqk', xh, xh)
        energy = jnp.where(mask == 0, jnp.float32(-1e20), energy) / math.sqrt(E)
        attn = jax.nn.softmax(energy, axis=-1)
        out = jnp.einsum('nhqk,nkhd->nqhd', attn, xh).reshape(N, S, E)
        attn_out = out @ s["wo"][l] + s["bo"][l, 0]
        x2n = _layernorm(attn_out + x, s["ln2_g"][l, 0], s["ln2_b"][l, 0])
        h1 = jax.nn.relu(x2n @ s["w1"][l] + s["b1"][l, 0])
        x = h1 @ s["w2"][l] + s["b2"][l, 0] + x2n
    return x @ params["w_out"] + params["b_out"][0]


# --------------------------- Parameter building ----------------------------

def make_positional_encoding(max_len, embed_size):
    pos = jnp.arange(max_len, dtype=jnp.float32)[:, None]
    div = jnp.exp(jnp.arange(0, embed_size, 2, dtype=jnp.float32)
                  * (-math.log(10000.0) / embed_size))
    pe = jnp.zeros((max_len, embed_size), jnp.float32)
    pe = pe.at[:, 0::2].set(jnp.sin(pos * div))
    pe = pe.at[:, 1::2].set(jnp.cos(pos * div))
    return pe[:, None, :]                                      # (max_len, 1, E)


def init_linear(key, fan_in, fan_out):
    # PyTorch-default-style uniform(-1/sqrt(fan_in), 1/sqrt(fan_in));
    # weight stored pre-transposed so kernels compute x @ W.
    kw, kb = jax.random.split(key)
    bound = 1.0 / math.sqrt(fan_in)
    w = jax.random.uniform(kw, (fan_in, fan_out), jnp.float32, -bound, bound)
    b = jax.random.uniform(kb, (1, fan_out), jnp.float32, -bound, bound)
    return w, b


def build_params(key, *, embed_size, num_layers, heads, vocab_size,
                 max_length, ff_hidden_size):
    keys = jax.random.split(key, 2 + 3 * num_layers)
    params = {
        "tok_emb": jax.random.normal(keys[0], (vocab_size, embed_size),
                                     jnp.float32),
        "pe": make_positional_encoding(max_length, embed_size),
    }
    params["w_out"], params["b_out"] = init_linear(keys[1], embed_size,
                                                   vocab_size)

    wos, bos, w1s, b1s, w2s, b2s = [], [], [], [], [], []
    for i in range(num_layers):
        ko, k1, k2 = keys[2 + 3 * i: 5 + 3 * i]
        wo, bo = init_linear(ko, embed_size, embed_size)       # attention fc_out
        w1, b1 = init_linear(k1, embed_size, ff_hidden_size)   # feed_forward fc1
        w2, b2 = init_linear(k2, ff_hidden_size, embed_size)   # feed_forward fc2
        wos.append(wo); bos.append(bo)
        w1s.append(w1); b1s.append(b1)
        w2s.append(w2); b2s.append(b2)

    params["stacked"] = {
        "ln1_g": jnp.ones((num_layers, 1, embed_size), jnp.float32),
        "ln1_b": jnp.zeros((num_layers, 1, embed_size), jnp.float32),
        "ln2_g": jnp.ones((num_layers, 1, embed_size), jnp.float32),
        "ln2_b": jnp.zeros((num_layers, 1, embed_size), jnp.float32),
        "wo": jnp.stack(wos), "bo": jnp.stack(bos),
        "w1": jnp.stack(w1s), "b1": jnp.stack(b1s),
        "w2": jnp.stack(w2s), "b2": jnp.stack(b2s),
    }
    # TODO(synk): the reference's per-head q/k/v Linear layers, the
    # GroupedQueryAttention branch, and RotaryPositionalEmbedding are
    # instantiated but never used in forward, so they are not materialized.
    return params


# --------------------------------- Main ------------------------------------

if __name__ == "__main__":
    embed_size = 32
    num_layers = 2
    heads = 4
    vocab_size = 64
    max_length = 16
    ff_hidden_size = 64
    dropout = 0.0          # identity dropout -> exact forward semantics

    batch, seq = 2, 8

    key = jax.random.PRNGKey(0)
    pkey, tkey = jax.random.split(key)

    params = build_params(pkey, embed_size=embed_size, num_layers=num_layers,
                          heads=heads, vocab_size=vocab_size,
                          max_length=max_length,
                          ff_hidden_size=ff_hidden_size)

    tokens = jax.random.randint(tkey, (batch, seq), 0, vocab_size,
                                dtype=jnp.int32)
    mask = jnp.tril(jnp.ones((seq, seq), jnp.float32))   # causal, 0 = masked

    logits = gpt2_forward(tokens, mask, params,
                          embed_size=embed_size, heads=heads,
                          num_layers=num_layers)
    jax.block_until_ready(logits)

    assert logits.shape == (batch, seq, vocab_size), logits.shape
    assert bool(jnp.all(jnp.isfinite(logits)))

    ref = gpt2_reference(tokens, mask, params, embed_size=embed_size,
                         heads=heads, num_layers=num_layers)
    max_err = float(jnp.max(jnp.abs(logits - ref)))
    assert max_err < 1e-2, f"mismatch vs reference: max |diff| = {max_err}"

    print("KERNEL_OK")
</pallas_src>

<mosaic_0001>
module attributes {stable_mosaic.version = 11 : i64} {
  func.func @gpt2_fused_kernel(%arg0: i32, %arg1: memref<16xi32, #tpu.memory_space<smem>>, %arg2: memref<16x16xf32, #tpu.memory_space<vmem>>, %arg3: memref<2x1x32xf32, #tpu.memory_space<vmem>>, %arg4: memref<64x1x32xf32, #tpu.memory_space<vmem>>, %arg5: memref<2x1x32xf32, #tpu.memory_space<vmem>>, %arg6: memref<2x1x32xf32, #tpu.memory_space<vmem>>, %arg7: memref<2x1x32xf32, #tpu.memory_space<vmem>>, %arg8: memref<2x1x32xf32, #tpu.memory_space<vmem>>, %arg9: memref<2x32x32xf32, #tpu.memory_space<vmem>>, %arg10: memref<2x1x32xf32, #tpu.memory_space<vmem>>, %arg11: memref<2x32x64xf32, #tpu.memory_space<vmem>>, %arg12: memref<2x1x64xf32, #tpu.memory_space<vmem>>, %arg13: memref<2x64x32xf32, #tpu.memory_space<vmem>>, %arg14: memref<2x1x32xf32, #tpu.memory_space<vmem>>, %arg15: memref<32x128xf32, #tpu.memory_space<vmem>>, %arg16: memref<1x128xf32, #tpu.memory_space<vmem>>, %arg17: memref<16x128xf32, #tpu.memory_space<vmem>>, %arg18: memref<16x32xf32, #tpu.memory_space<vmem>>) attributes {dimension_semantics = [#tpu.dimension_semantics<arbitrary>], iteration_bounds = array<i64: 1>, scalar_prefetch = 1 : i64, scratch_operands = 1 : i64, tpu.core_type = #tpu.core_type<tc>, window_params = [{pipeline_mode = #tpu.pipeline_mode<synchronous>, transform_indices = @transform_0, window_bounds = array<i64: 16, 16>}, {pipeline_mode = #tpu.pipeline_mode<synchronous>, transform_indices = @transform_1, window_bounds = array<i64: 2, 1, 32>}, {pipeline_mode = #tpu.pipeline_mode<synchronous>, transform_indices = @transform_2, window_bounds = array<i64: 64, 1, 32>}, {pipeline_mode = #tpu.pipeline_mode<synchronous>, transform_indices = @transform_3, window_bounds = array<i64: 2, 1, 32>}, {pipeline_mode = #tpu.pipeline_mode<synchronous>, transform_indices = @transform_4, window_bounds = array<i64: 2, 1, 32>}, {pipeline_mode = #tpu.pipeline_mode<synchronous>, transform_indices = @transform_5, window_bounds = array<i64: 2, 1, 32>}, {pipeline_mode = #tpu.pipeline_mode<synchronous>, transform_indices = @transform_6, window_bounds = array<i64: 2, 1, 32>}, {pipeline_mode = #tpu.pipeline_mode<synchronous>, transform_indices = @transform_7, window_bounds = array<i64: 2, 32, 32>}, {pipeline_mode = #tpu.pipeline_mode<synchronous>, transform_indices = @transform_8, window_bounds = array<i64: 2, 1, 32>}, {pipeline_mode = #tpu.pipeline_mode<synchronous>, transform_indices = @transform_9, window_bounds = array<i64: 2, 32, 64>}, {pipeline_mode = #tpu.pipeline_mode<synchronous>, transform_indices = @transform_10, window_bounds = array<i64: 2, 1, 64>}, {pipeline_mode = #tpu.pipeline_mode<synchronous>, transform_indices = @transform_11, window_bounds = array<i64: 2, 64, 32>}, {pipeline_mode = #tpu.pipeline_mode<synchronous>, transform_indices = @transform_12, window_bounds = array<i64: 2, 1, 32>}, {pipeline_mode = #tpu.pipeline_mode<synchronous>, transform_indices = @transform_13, window_bounds = array<i64: 32, 128>}, {pipeline_mode = #tpu.pipeline_mode<synchronous>, transform_indices = @transform_14, window_bounds = array<i64: 1, 128>}, {pipeline_mode = #tpu.pipeline_mode<synchronous>, transform_indices = @transform_15, window_bounds = array<i64: 16, 128>}]} {
    %c0 = arith.constant 0 : index
    %0 = memref.load %arg1[%c0] : memref<16xi32, #tpu.memory_space<smem>>
    %1 = arith.index_cast %0 : i32 to index
    %c0_0 = arith.constant 0 : index
    %c0_1 = arith.constant 0 : index
    %2 = vector.load %arg4[%1, %c0_0, %c0_1] : memref<64x1x32xf32, #tpu.memory_space<vmem>>, vector<1x1x32xf32>
    %3 = vector.shape_cast %2 : vector<1x1x32xf32> to vector<1x32xf32>
    %c0_2 = arith.constant 0 : index
    %c0_3 = arith.constant 0 : index
    %c0_4 = arith.constant 0 : index
    %4 = vector.load %arg3[%c0_2, %c0_3, %c0_4] : memref<2x1x32xf32, #tpu.memory_space<vmem>>, vector<1x1x32xf32>
    %5 = vector.shape_cast %4 : vector<1x1x32xf32> to vector<1x32xf32>
    %6 = arith.addf %3, %5 : vector<1x32xf32>
    %c0_5 = arith.constant 0 : index
    %c0_6 = arith.constant 0 : index
    %7 = vector.load %arg18[%c0_5, %c0_6] : memref<16x32xf32, #tpu.memory_space<vmem>>, vector<1x32xf32>
    tpu.vector_store %arg18[%c0_5, %c0_6], %6 {strides = array<i32>} : memref<16x32xf32, #tpu.memory_space<vmem>>, vector<1x32xf32>,
    %c1 = arith.constant 1 : index
    %8 = memref.load %arg1[%c1] : memref<16xi32, #tpu.memory_space<smem>>
    %9 = arith.index_cast %8 : i32 to index
    %c0_7 = arith.constant 0 : index
    %c0_8 = arith.constant 0 : index
    %10 = vector.load %arg4[%9, %c0_7, %c0_8] : memref<64x1x32xf32, #tpu.memory_space<vmem>>, vector<1x1x32xf32>
    %11 = vector.shape_cast %10 : vector<1x1x32xf32> to vector<1x32xf32>
    %c0_9 = arith.constant 0 : index
    %c0_10 = arith.constant 0 : index
    %c0_11 = arith.constant 0 : index
    %12 = vector.load %arg3[%c0_9, %c0_10, %c0_11] : memref<2x1x32xf32, #tpu.memory_space<vmem>>, vector<1x1x32xf32>
    %13 = vector.shape_cast %12 : vector<1x1x32xf32> to vector<1x32xf32>
    %14 = arith.addf %11, %13 : vector<1x32xf32>
    %c1_12 = arith.constant 1 : index
    %c0_13 = arith.constant 0 : index
    %15 = vector.load %arg18[%c1_12, %c0_13] : memref<16x32xf32, #tpu.memory_space<vmem>>, vector<1x32xf32>
    tpu.vector_store %arg18[%c1_12, %c0_13], %14 {strides = array<i32>} : memref<16x32xf32, #tpu.memory_space<vmem>>, vector<1x32xf32>,
    %c2 = arith.constant 2 : index
    %16 = memref.load %arg1[%c2] : memref<16xi32, #tpu.memory_space<smem>>
    %17 = arith.index_cast %16 : i32 to index
    %c0_14 = arith.constant 0 : index
    %c0_15 = arith.constant 0 : index
    %18 = vector.load %arg4[%17, %c0_14, %c0_15] : memref<64x1x32xf32, #tpu.memory_space<vmem>>, vector<1x1x32xf32>
    %19 = vector.shape_cast %18 : vector<1x1x32xf32> to vector<1x32xf32>
    %c0_16 = arith.constant 0 : index
    %c0_17 = arith.constant 0 : index
    %c0_18 = arith.constant 0 : index
    %20 = vector.load %arg3[%c0_16, %c0_17, %c0_18] : memref<2x1x32xf32, #tpu.memory_space<vmem>>, vector<1x1x32xf32>
    %21 = vector.shape_cast %20 : vector<1x1x32xf32> to vector<1x32xf32>
    %22 = arith.addf %19, %21 : vector<1x32xf32>
    %c2_19 = arith.constant 2 : index
    %c0_20 = arith.constant 0 : index
    %23 = vector.load %arg18[%c2_19, %c0_20] : memref<16x32xf32, #tpu.memory_space<vmem>>, vector<1x32xf32>
    tpu.vector_store %arg18[%c2_19, %c0_20], %22 {strides = array<i32>} : memref<16x32xf32, #tpu.memory_space<vmem>>, vector<1x32xf32>,
    %c3 = arith.constant 3 : index
    %24 = memref.load %arg1[%c3] : memref<16xi32, #tpu.memory_space<smem>>
    %25 = arith.index_cast %24 : i32 to index
    %c0_21 = arith.constant 0 : index
    %c0_22 = arith.constant 0 : index
    %26 = vector.load %arg4[%25, %c0_21, %c0_22] : memref<64x1x32xf32, #tpu.memory_space<vmem>>, vector<1x1x32xf32>
    %27 = vector.shape_cast %26 : vector<1x1x32xf32> to vector<1x32xf32>
    %c0_23 = arith.constant 0 : index
    %c0_24 = arith.constant 0 : index
    %c0_25 = arith.constant 0 : index
    %28 = vector.load %arg3[%c0_23, %c0_24, %c0_25] : memref<2x1x32xf32, #tpu.memory_space<vmem>>, vector<1x1x32xf32>
    %29 = vector.shape_cast %28 : vector<1x1x32xf32> to vector<1x32xf32>
    %30 = arith.addf %27, %29 : vector<1x32xf32>
    %c3_26 = arith.constant 3 : index
    %c0_27 = arith.constant 0 : index
    %31 = vector.load %arg18[%c3_26, %c0_27] : memref<16x32xf32, #tpu.memory_space<vmem>>, vector<1x32xf32>
    tpu.vector_store %arg18[%c3_26, %c0_27], %30 {strides = array<i32>} : memref<16x32xf32, #tpu.memory_space<vmem>>, vector<1x32xf32>,
    %c4 = arith.constant 4 : index
    %32 = memref.load %arg1[%c4] : memref<16xi32, #tpu.memory_space<smem>>
    %33 = arith.index_cast %32 : i32 to index
    %c0_28 = arith.constant 0 : index
    %c0_29 = arith.constant 0 : index
    %34 = vector.load %arg4[%33, %c0_28, %c0_29] : memref<64x1x32xf32, #tpu.memory_space<vmem>>, vector<1x1x32xf32>
    %35 = vector.shape_cast %34 : vector<1x1x32xf32> to vector<1x32xf32>
    %c0_30 = arith.constant 0 : index
    %c0_31 = arith.constant 0 : index
    %c0_32 = arith.constant 0 : index
    %36 = vector.load %arg3[%c0_30, %c0_31, %c0_32] : memref<2x1x32xf32, #tpu.memory_space<vmem>>, vector<1x1x32xf32>
    %37 = vector.shape_cast %36 : vector<1x1x32xf32> to vector<1x32xf32>
    %38 = arith.addf %35, %37 : vector<1x32xf32>
    %c4_33 = arith.constant 4 : index
    %c0_34 = arith.constant 0 : index
    %39 = vector.load %arg18[%c4_33, %c0_34] : memref<16x32xf32, #tpu.memory_space<vmem>>, vector<1x32xf32>
    tpu.vector_store %arg18[%c4_33, %c0_34], %38 {strides = array<i32>} : memref<16x32xf32, #tpu.memory_space<vmem>>, vector<1x32xf32>,
    %c5 = arith.constant 5 : index
    %40 = memref.load %arg1[%c5] : memref<16xi32, #tpu.memory_space<smem>>
    %41 = arith.index_cast %40 : i32 to index
    %c0_35 = arith.constant 0 : index
    %c0_36 = arith.constant 0 : index
    %42 = vector.load %arg4[%41, %c0_35, %c0_36] : memref<64x1x32xf32, #tpu.memory_space<vmem>>, vector<1x1x32xf32>
    %43 = vector.shape_cast %42 : vector<1x1x32xf32> to vector<1x32xf32>
    %c0_37 = arith.constant 0 : index
    %c0_38 = arith.constant 0 : index
    %c0_39 = arith.constant 0 : index
    %44 = vector.load %arg3[%c0_37, %c0_38, %c0_39] : memref<2x1x32xf32, #tpu.memory_space<vmem>>, vector<1x1x32xf32>
    %45 = vector.shape_cast %44 : vector<1x1x32xf32> to vector<1x32xf32>
    %46 = arith.addf %43, %45 : vector<1x32xf32>
    %c5_40 = arith.constant 5 : index
    %c0_41 = arith.constant 0 : index
    %47 = vector.load %arg18[%c5_40, %c0_41] : memref<16x32xf32, #tpu.memory_space<vmem>>, vector<1x32xf32>
    tpu.vector_store %arg18[%c5_40, %c0_41], %46 {strides = array<i32>} : memref<16x32xf32, #tpu.memory_space<vmem>>, vector<1x32xf32>,
    %c6 = arith.constant 6 : index
    %48 = memref.load %arg1[%c6] : memref<16xi32, #tpu.memory_space<smem>>
    %49 = arith.index_cast %48 : i32 to index
    %c0_42 = arith.constant 0 : index
    %c0_43 = arith.constant 0 : index
    %50 = vector.load %arg4[%49, %c0_42, %c0_43] : memref<64x1x32xf32, #tpu.memory_space<vmem>>, vector<1x1x32xf32>
    %51 = vector.shape_cast %50 : vector<1x1x32xf32> to vector<1x32xf32>
    %c0_44 = arith.constant 0 : index
    %c0_45 = arith.constant 0 : index
    %c0_46 = arith.constant 0 : index
    %52 = vector.load %arg3[%c0_44, %c0_45, %c0_46] : memref<2x1x32xf32, #tpu.memory_space<vmem>>, vector<1x1x32xf32>
    %53 = vector.shape_cast %52 : vector<1x1x32xf32> to vector<1x32xf32>
    %54 = arith.addf %51, %53 : vector<1x32xf32>
    %c6_47 = arith.constant 6 : index
    %c0_48 = arith.constant 0 : index
    %55 = vector.load %arg18[%c6_47, %c0_48] : memref<16x32xf32, #tpu.memory_space<vmem>>, vector<1x32xf32>
    tpu.vector_store %arg18[%c6_47, %c0_48], %54 {strides = array<i32>} : memref<16x32xf32, #tpu.memory_space<vmem>>, vector<1x32xf32>,
    %c7 = arith.constant 7 : index
    %56 = memref.load %arg1[%c7] : memref<16xi32, #tpu.memory_space<smem>>
    %57 = arith.index_cast %56 : i32 to index
    %c0_49 = arith.constant 0 : index
    %c0_50 = arith.constant 0 : index
    %58 = vector.load %arg4[%57, %c0_49, %c0_50] : memref<64x1x32xf32, #tpu.memory_space<vmem>>, vector<1x1x32xf32>
    %59 = vector.shape_cast %58 : vector<1x1x32xf32> to vector<1x32xf32>
    %c0_51 = arith.constant 0 : index
    %c0_52 = arith.constant 0 : index
    %c0_53 = arith.constant 0 : index
    %60 = vector.load %arg3[%c0_51, %c0_52, %c0_53] : memref<2x1x32xf32, #tpu.memory_space<vmem>>, vector<1x1x32xf32>
    %61 = vector.shape_cast %60 : vector<1x1x32xf32> to vector<1x32xf32>
    %62 = arith.addf %59, %61 : vector<1x32xf32>
    %c7_54 = arith.constant 7 : index
    %c0_55 = arith.constant 0 : index
    %63 = vector.load %arg18[%c7_54, %c0_55] : memref<16x32xf32, #tpu.memory_space<vmem>>, vector<1x32xf32>
    tpu.vector_store %arg18[%c7_54, %c0_55], %62 {strides = array<i32>} : memref<16x32xf32, #tpu.memory_space<vmem>>, vector<1x32xf32>,
    %c8 = arith.constant 8 : index
    %64 = memref.load %arg1[%c8] : memref<16xi32, #tpu.memory_space<smem>>
    %65 = arith.index_cast %64 : i32 to index
    %c0_56 = arith.constant 0 : index
    %c0_57 = arith.constant 0 : index
    %66 = vector.load %arg4[%65, %c0_56, %c0_57] : memref<64x1x32xf32, #tpu.memory_space<vmem>>, vector<1x1x32xf32>
    %67 = vector.shape_cast %66 : vector<1x1x32xf32> to vector<1x32xf32>
    %c1_58 = arith.constant 1 : index
    %c0_59 = arith.constant 0 : index
    %c0_60 = arith.constant 0 : index
    %68 = vector.load %arg3[%c1_58, %c0_59, %c0_60] : memref<2x1x32xf32, #tpu.memory_space<vmem>>, vector<1x1x32xf32>
    %69 = vector.shape_cast %68 : vector<1x1x32xf32> to vector<1x32xf32>
    %70 = arith.addf %67, %69 : vector<1x32xf32>
    %c8_61 = arith.constant 8 : index
    %c0_62 = arith.constant 0 : index
    %71 = vector.load %arg18[%c8_61, %c0_62] : memref<16x32xf32, #tpu.memory_space<vmem>>, vector<1x32xf32>
    tpu.vector_store %arg18[%c8_61, %c0_62], %70 {strides = array<i32>} : memref<16x32xf32, #tpu.memory_space<vmem>>, vector<1x32xf32>,
    %c9 = arith.constant 9 : index
    %72 = memref.load %arg1[%c9] : memref<16xi32, #tpu.memory_space<smem>>
    %73 = arith.index_cast %72 : i32 to index
    %c0_63 = arith.constant 0 : index
    %c0_64 = arith.constant 0 : index
    %74 = vector.load %arg4[%73, %c0_63, %c0_64] : memref<64x1x32xf32, #tpu.memory_space<vmem>>, vector<1x1x32xf32>
    %75 = vector.shape_cast %74 : vector<1x1x32xf32> to vector<1x32xf32>
    %c1_65 = arith.constant 1 : index
    %c0_66 = arith.constant 0 : index
    %c0_67 = arith.constant 0 : index
    %76 = vector.load %arg3[%c1_65, %c0_66, %c0_67] : memref<2x1x32xf32, #tpu.memory_space<vmem>>, vector<1x1x32xf32>
    %77 = vector.shape_cast %76 : vector<1x1x32xf32> to vector<1x32xf32>
    %78 = arith.addf %75, %77 : vector<1x32xf32>
    %c9_68 = arith.constant 9 : index
    %c0_69 = arith.constant 0 : index
    %79 = vector.load %arg18[%c9_68, %c0_69] : memref<16x32xf32, #tpu.memory_space<vmem>>, vector<1x32xf32>
    tpu.vector_store %arg18[%c9_68, %c0_69], %78 {strides = array<i32>} : memref<16x32xf32, #tpu.memory_space<vmem>>, vector<1x32xf32>,
    %c10 = arith.constant 10 : index
    %80 = memref.load %arg1[%c10] : memref<16xi32, #tpu.memory_space<smem>>
    %81 = arith.index_cast %80 : i32 to index
    %c0_70 = arith.constant 0 : index
    %c0_71 = arith.constant 0 : index
    %82 = vector.load %arg4[%81, %c0_70, %c0_71] : memref<64x1x32xf32, #tpu.memory_space<vmem>>, vector<1x1x32xf32>
    %83 = vector.shape_cast %82 : vector<1x1x32xf32> to vector<1x32xf32>
    %c1_72 = arith.constant 1 : index
    %c0_73 = arith.constant 0 : index
    %c0_74 = arith.constant 0 : index
    %84 = vector.load %arg3[%c1_72, %c0_73, %c0_74] : memref<2x1x32xf32, #tpu.memory_space<vmem>>, vector<1x1x32xf32>
    %85 = vector.shape_cast %84 : vector<1x1x32xf32> to vector<1x32xf32>
    %86 = arith.addf %83, %85 : vector<1x32xf32>
    %c10_75 = arith.constant 10 : index
    %c0_76 = arith.constant 0 : index
    %87 = vector.load %arg18[%c10_75, %c0_76] : memref<16x32xf32, #tpu.memory_space<vmem>>, vector<1x32xf32>
    tpu.vector_store %arg18[%c10_75, %c0_76], %86 {strides = array<i32>} : memref<16x32xf32, #tpu.memory_space<vmem>>, vector<1x32xf32>,
    %c11 = arith.constant 11 : index
    %88 = memref.load %arg1[%c11] : memref<16xi32, #tpu.memory_space<smem>>
    %89 = arith.index_cast %88 : i32 to index
    %c0_77 = arith.constant 0 : index
    %c0_78 = arith.constant 0 : index
    %90 = vector.load %arg4[%89, %c0_77, %c0_78] : memref<64x1x32xf32, #tpu.memory_space<vmem>>, vector<1x1x32xf32>
    %91 = vector.shape_cast %90 : vector<1x1x32xf32> to vector<1x32xf32>
    %c1_79 = arith.constant 1 : index
    %c0_80 = arith.constant 0 : index
    %c0_81 = arith.constant 0 : index
    %92 = vector.load %arg3[%c1_79, %c0_80, %c0_81] : memref<2x1x32xf32, #tpu.memory_space<vmem>>, vector<1x1x32xf32>
    %93 = vector.shape_cast %92 : vector<1x1x32xf32> to vector<1x32xf32>
    %94 = arith.addf %91, %93 : vector<1x32xf32>
    %c11_82 = arith.constant 11 : index
    %c0_83 = arith.constant 0 : index
    %95 = vector.load %arg18[%c11_82, %c0_83] : memref<16x32xf32, #tpu.memory_space<vmem>>, vector<1x32xf32>
    tpu.vector_store %arg18[%c11_82, %c0_83], %94 {strides = array<i32>} : memref<16x32xf32, #tpu.memory_space<vmem>>, vector<1x32xf32>,
    %c12 = arith.constant 12 : index
    %96 = memref.load %arg1[%c12] : memref<16xi32, #tpu.memory_space<smem>>
    %97 = arith.index_cast %96 : i32 to index
    %c0_84 = arith.constant 0 : index
    %c0_85 = arith.constant 0 : index
    %98 = vector.load %arg4[%97, %c0_84, %c0_85] : memref<64x1x32xf32, #tpu.memory_space<vmem>>, vector<1x1x32xf32>
    %99 = vector.shape_cast %98 : vector<1x1x32xf32> to vector<1x32xf32>
    %c1_86 = arith.constant 1 : index
    %c0_87 = arith.constant 0 : index
    %c0_88 = arith.constant 0 : index
    %100 = vector.load %arg3[%c1_86, %c0_87, %c0_88] : memref<2x1x32xf32, #tpu.memory_space<vmem>>, vector<1x1x32xf32>
    %101 = vector.shape_cast %100 : vector<1x1x32xf32> to vector<1x32xf32>
    %102 = arith.addf %99, %101 : vector<1x32xf32>
    %c12_89 = arith.constant 12 : index
    %c0_90 = arith.constant 0 : index
    %103 = vector.load %arg18[%c12_89, %c0_90] : memref<16x32xf32, #tpu.memory_space<vmem>>, vector<1x32xf32>
    tpu.vector_store %arg18[%c12_89, %c0_90], %102 {strides = array<i32>} : memref<16x32xf32, #tpu.memory_space<vmem>>, vector<1x32xf32>,
    %c13 = arith.constant 13 : index
    %104 = memref.load %arg1[%c13] : memref<16xi32, #tpu.memory_space<smem>>
    %105 = arith.index_cast %104 : i32 to index
    %c0_91 = arith.constant 0 : index
    %c0_92 = arith.constant 0 : index
    %106 = vector.load %arg4[%105, %c0_91, %c0_92] : memref<64x1x32xf32, #tpu.memory_space<vmem>>, vector<1x1x32xf32>
    %107 = vector.shape_cast %106 : vector<1x1x32xf32> to vector<1x32xf32>
    %c1_93 = arith.constant 1 : index
    %c0_94 = arith.constant 0 : index
    %c0_95 = arith.constant 0 : index
    %108 = vector.load %arg3[%c1_93, %c0_94, %c0_95] : memref<2x1x32xf32, #tpu.memory_space<vmem>>, vector<1x1x32xf32>
    %109 = vector.shape_cast %108 : vector<1x1x32xf32> to vector<1x32xf32>
    %110 = arith.addf %107, %109 : vector<1x32xf32>
    %c13_96 = arith.constant 13 : index
    %c0_97 = arith.constant 0 : index
    %111 = vector.load %arg18[%c13_96, %c0_97] : memref<16x32xf32, #tpu.memory_space<vmem>>, vector<1x32xf32>
    tpu.vector_store %arg18[%c13_96, %c0_97], %110 {strides = array<i32>} : memref<16x32xf32, #tpu.memory_space<vmem>>, vector<1x32xf32>,
    %c14 = arith.constant 14 : index
    %112 = memref.load %arg1[%c14] : memref<16xi32, #tpu.memory_space<smem>>
    %113 = arith.index_cast %112 : i32 to index
    %c0_98 = arith.constant 0 : index
    %c0_99 = arith.constant 0 : index
    %114 = vector.load %arg4[%113, %c0_98, %c0_99] : memref<64x1x32xf32, #tpu.memory_space<vmem>>, vector<1x1x32xf32>
    %115 = vector.shape_cast %114 : vector<1x1x32xf32> to vector<1x32xf32>
    %c1_100 = arith.constant 1 : index
    %c0_101 = arith.constant 0 : index
    %c0_102 = arith.constant 0 : index
    %116 = vector.load %arg3[%c1_100, %c0_101, %c0_102] : memref<2x1x32xf32, #tpu.memory_space<vmem>>, vector<1x1x32xf32>
    %117 = vector.shape_cast %116 : vector<1x1x32xf32> to vector<1x32xf32>
    %118 = arith.addf %115, %117 : vector<1x32xf32>
    %c14_103 = arith.constant 14 : index
    %c0_104 = arith.constant 0 : index
    %119 = vector.load %arg18[%c14_103, %c0_104] : memref<16x32xf32, #tpu.memory_space<vmem>>, vector<1x32xf32>
    tpu.vector_store %arg18[%c14_103, %c0_104], %118 {strides = array<i32>} : memref<16x32xf32, #tpu.memory_space<vmem>>, vector<1x32xf32>,
    %c15 = arith.constant 15 : index
    %120 = memref.load %arg1[%c15] : memref<16xi32, #tpu.memory_space<smem>>
    %121 = arith.index_cast %120 : i32 to index
    %c0_105 = arith.constant 0 : index
    %c0_106 = arith.constant 0 : index
    %122 = vector.load %arg4[%121, %c0_105, %c0_106] : memref<64x1x32xf32, #tpu.memory_space<vmem>>, vector<1x1x32xf32>
    %123 = vector.shape_cast %122 : vector<1x1x32xf32> to vector<1x32xf32>
    %c1_107 = arith.constant 1 : index
    %c0_108 = arith.constant 0 : index
    %c0_109 = arith.constant 0 : index
    %124 = vector.load %arg3[%c1_107, %c0_108, %c0_109] : memref<2x1x32xf32, #tpu.memory_space<vmem>>, vector<1x1x32xf32>
    %125 = vector.shape_cast %124 : vector<1x1x32xf32> to vector<1x32xf32>
    %126 = arith.addf %123, %125 : vector<1x32xf32>
    %c15_110 = arith.constant 15 : index
    %c0_111 = arith.constant 0 : index
    %127 = vector.load %arg18[%c15_110, %c0_111] : memref<16x32xf32, #tpu.memory_space<vmem>>, vector<1x32xf32>
    tpu.vector_store %arg18[%c15_110, %c0_111], %126 {strides = array<i32>} : memref<16x32xf32, #tpu.memory_space<vmem>>, vector<1x32xf32>,
    %c0_112 = arith.constant 0 : index
    %c0_113 = arith.constant 0 : index
    %128 = vector.load %arg18[%c0_112, %c0_113] : memref<16x32xf32, #tpu.memory_space<vmem>>, vector<16x32xf32>
    %c0_114 = arith.constant 0 : index
    %c0_115 = arith.constant 0 : index
    %129 = vector.load %arg2[%c0_114, %c0_115] : memref<16x16xf32, #tpu.memory_space<vmem>>, vector<16x16xf32>
    %cst = arith.constant 0.000000e+00 : f32
    %130 = vector.broadcast %cst : f32 to vector<16x16xf32>
    %131 = arith.cmpf oeq, %129, %130 : vector<16x16xf32>
    %c0_116 = arith.constant 0 : index
    %c0_117 = arith.constant 0 : index
    %c0_118 = arith.constant 0 : index
    %132 = vector.load %arg5[%c0_116, %c0_117, %c0_118] : memref<2x1x32xf32, #tpu.memory_space<vmem>>, vector<1x1x32xf32>
    %133 = vector.shape_cast %132 : vector<1x1x32xf32> to vector<1x32xf32>
    %c0_119 = arith.constant 0 : index
    %c0_120 = arith.constant 0 : index
    %c0_121 = arith.constant 0 : index
    %134 = vector.load %arg6[%c0_119, %c0_120, %c0_121] : memref<2x1x32xf32, #tpu.memory_space<vmem>>, vector<1x1x32xf32>
    %135 = vector.shape_cast %134 : vector<1x1x32xf32> to vector<1x32xf32>
    %cst_122 = arith.constant dense<0.000000e+00> : vector<16xf32>
    %136 = vector.multi_reduction <add>, %128, %cst_122 [1] : vector<16x32xf32> to vector<16xf32>
    %137 = vector.shape_cast %136 : vector<16xf32> to vector<16x1xf32>
    %cst_123 = arith.constant 3.200000e+01 : f32
    %138 = vector.broadcast %cst_123 : f32 to vector<16x1xf32>
    %139 = arith.divf %137, %138 : vector<16x1xf32>
    %140 = vector.broadcast %139 : vector<16x1xf32> to vector<16x32xf32>
    %141 = arith.subf %128, %140 : vector<16x32xf32>
    %142 = arith.mulf %141, %141 : vector<16x32xf32>
    %cst_124 = arith.constant dense<0.000000e+00> : vector<16xf32>
    %143 = vector.multi_reduction <add>, %142, %cst_124 [1] : vector<16x32xf32> to vector<16xf32>
    %144 = vector.shape_cast %143 : vector<16xf32> to vector<16x1xf32>
    %cst_125 = arith.constant 3.200000e+01 : f32
    %145 = vector.broadcast %cst_125 : f32 to vector<16x1xf32>
    %146 = arith.divf %144, %145 : vector<16x1xf32>
    %147 = vector.broadcast %139 : vector<16x1xf32> to vector<16x32xf32>
    %148 = arith.subf %128, %147 : vector<16x32xf32>
    %cst_126 = arith.constant 9.99999974E-6 : f32
    %149 = vector.broadcast %cst_126 : f32 to vector<16x1xf32>
    %150 = arith.addf %146, %149 : vector<16x1xf32>
    %151 = math.rsqrt %150 : vector<16x1xf32>
    %152 = vector.broadcast %151 : vector<16x1xf32> to vector<16x32xf32>
    %153 = arith.mulf %148, %152 : vector<16x32xf32>
    %154 = vector.broadcast %133 : vector<1x32xf32> to vector<16x32xf32>
    %155 = arith.mulf %153, %154 : vector<16x32xf32>
    %156 = vector.broadcast %135 : vector<1x32xf32> to vector<16x32xf32>
    %157 = arith.addf %155, %156 : vector<16x32xf32>
    %cst_127 = arith.constant 0.176776692 : f32
    %158 = vector.broadcast %cst_127 : f32 to vector<16x32xf32>
    %159 = arith.mulf %157, %158 : vector<16x32xf32>
    %160 = vector.extract_strided_slice %157 {offsets = [0, 0], sizes = [16, 8], strides = [1, 1]} : vector<16x32xf32> to vector<16x8xf32>
    %161 = vector.extract_strided_slice %159 {offsets = [0, 0], sizes = [16, 8], strides = [1, 1]} : vector<16x32xf32> to vector<16x8xf32>
    %cst_128 = arith.constant dense<0.000000e+00> : vector<16x16xf32>
    %162 = tpu.matmul %161, %160, %cst_128 {dimension_numbers = #tpu.dot_dimension_numbers<[1], [1], [0], [0], [0, 0, 1, 0], [], []>} : vector<16x8xf32>, vector<16x8xf32>, vector<16x16xf32> -> vector<16x16xf32>
    %cst_129 = arith.constant -1.000000e+20 : f32
    %163 = vector.broadcast %cst_129 : f32 to vector<16x16xf32>
    %164 = arith.select %131, %163, %162 : vector<16x16xi1>, vector<16x16xf32>
    %cst_130 = arith.constant dense<0xFF800000> : vector<16xf32>
    %165 = vector.multi_reduction <maximumf>, %164, %cst_130 [1] : vector<16x16xf32> to vector<16xf32>
    %166 = vector.shape_cast %165 : vector<16xf32> to vector<16x1xf32>
    %167 = vector.broadcast %166 : vector<16x1xf32> to vector<16x16xf32>
    %168 = arith.subf %164, %167 : vector<16x16xf32>
    %169 = math.exp %168 : vector<16x16xf32>
    %cst_131 = arith.constant dense<0.000000e+00> : vector<16xf32>
    %170 = vector.multi_reduction <add>, %169, %cst_131 [1] : vector<16x16xf32> to vector<16xf32>
    %171 = vector.shape_cast %170 : vector<16xf32> to vector<16x1xf32>
    %172 = tpu.reciprocal %171 {approx = true} : vector<16x1xf32> -> vector<16x1xf32>
    %173 = vector.broadcast %172 : vector<16x1xf32> to vector<16x16xf32>
    %174 = arith.mulf %169, %173 : vector<16x16xf32>
    %cst_132 = arith.constant dense<0.000000e+00> : vector<16x8xf32>
    %175 = tpu.matmul %174, %160, %cst_132 {dimension_numbers = #tpu.dot_dimension_numbers<[1], [0], [0], [1], [0, 0, 1, 1], [], []>} : vector<16x16xf32>, vector<16x8xf32>, vector<16x8xf32> -> vector<16x8xf32>
    %c0_133 = arith.constant 0 : index
    %c0_134 = arith.constant 0 : index
    %176 = vector.load %arg18[%c0_133, %c0_134] : memref<16x32xf32, #tpu.memory_space<vmem>>, vector<16x8xf32>
    tpu.vector_store %arg18[%c0_133, %c0_134], %175 {strides = array<i32>} : memref<16x32xf32, #tpu.memory_space<vmem>>, vector<16x8xf32>,
    %177 = vector.extract_strided_slice %157 {offsets = [0, 8], sizes = [16, 8], strides = [1, 1]} : vector<16x32xf32> to vector<16x8xf32>
    %178 = vector.extract_strided_slice %159 {offsets = [0, 8], sizes = [16, 8], strides = [1, 1]} : vector<16x32xf32> to vector<16x8xf32>
    %cst_135 = arith.constant dense<0.000000e+00> : vector<16x16xf32>
    %179 = tpu.matmul %178, %177, %cst_135 {dimension_numbers = #tpu.dot_dimension_numbers<[1], [1], [0], [0], [0, 0, 1, 0], [], []>} : vector<16x8xf32>, vector<16x8xf32>, vector<16x16xf32> -> vector<16x16xf32>
    %cst_136 = arith.constant -1.000000e+20 : f32
    %180 = vector.broadcast %cst_136 : f32 to vector<16x16xf32>
    %181 = arith.select %131, %180, %179 : vector<16x16xi1>, vector<16x16xf32>
    %cst_137 = arith.constant dense<0xFF800000> : vector<16xf32>
    %182 = vector.multi_reduction <maximumf>, %181, %cst_137 [1] : vector<16x16xf32> to vector<16xf32>
    %183 = vector.shape_cast %182 : vector<16xf32> to vector<16x1xf32>
    %184 = vector.broadcast %183 : vector<16x1xf32> to vector<16x16xf32>
    %185 = arith.subf %181, %184 : vector<16x16xf32>
    %186 = math.exp %185 : vector<16x16xf32>
    %cst_138 = arith.constant dense<0.000000e+00> : vector<16xf32>
    %187 = vector.multi_reduction <add>, %186, %cst_138 [1] : vector<16x16xf32> to vector<16xf32>
    %188 = vector.shape_cast %187 : vector<16xf32> to vector<16x1xf32>
    %189 = tpu.reciprocal %188 {approx = true} : vector<16x1xf32> -> vector<16x1xf32>
    %190 = vector.broadcast %189 : vector<16x1xf32> to vector<16x16xf32>
    %191 = arith.mulf %186, %190 : vector<16x16xf32>
    %cst_139 = arith.constant dense<0.000000e+00> : vector<16x8xf32>
    %192 = tpu.matmul %191, %177, %cst_139 {dimension_numbers = #tpu.dot_dimension_numbers<[1], [0], [0], [1], [0, 0, 1, 1], [], []>} : vector<16x16xf32>, vector<16x8xf32>, vector<16x8xf32> -> vector<16x8xf32>
    %c0_140 = arith.constant 0 : index
    %c8_141 = arith.constant 8 : index
    %193 = vector.load %arg18[%c0_140, %c8_141] : memref<16x32xf32, #tpu.memory_space<vmem>>, vector<16x8xf32>
    tpu.vector_store %arg18[%c0_140, %c8_141], %192 {strides = array<i32>} : memref<16x32xf32, #tpu.memory_space<vmem>>, vector<16x8xf32>,
    %194 = vector.extract_strided_slice %157 {offsets = [0, 16], sizes = [16, 8], strides = [1, 1]} : vector<16x32xf32> to vector<16x8xf32>
    %195 = vector.extract_strided_slice %159 {offsets = [0, 16], sizes = [16, 8], strides = [1, 1]} : vector<16x32xf32> to vector<16x8xf32>
    %cst_142 = arith.constant dense<0.000000e+00> : vector<16x16xf32>
    %196 = tpu.matmul %195, %194, %cst_142 {dimension_numbers = #tpu.dot_dimension_numbers<[1], [1], [0], [0], [0, 0, 1, 0], [], []>} : vector<16x8xf32>, vector<16x8xf32>, vector<16x16xf32> -> vector<16x16xf32>
    %cst_143 = arith.constant -1.000000e+20 : f32
    %197 = vector.broadcast %cst_143 : f32 to vector<16x16xf32>
    %198 = arith.select %131, %197, %196 : vector<16x16xi1>, vector<16x16xf32>
    %cst_144 = arith.constant dense<0xFF800000> : vector<16xf32>
    %199 = vector.multi_reduction <maximumf>, %198, %cst_144 [1] : vector<16x16xf32> to vector<16xf32>
    %200 = vector.shape_cast %199 : vector<16xf32> to vector<16x1xf32>
    %201 = vector.broadcast %200 : vector<16x1xf32> to vector<16x16xf32>
    %202 = arith.subf %198, %201 : vector<16x16xf32>
    %203 = math.exp %202 : vector<16x16xf32>
    %cst_145 = arith.constant dense<0.000000e+00> : vector<16xf32>
    %204 = vector.multi_reduction <add>, %203, %cst_145 [1] : vector<16x16xf32> to vector<16xf32>
    %205 = vector.shape_cast %204 : vector<16xf32> to vector<16x1xf32>
    %206 = tpu.reciprocal %205 {approx = true} : vector<16x1xf32> -> vector<16x1xf32>
    %207 = vector.broadcast %206 : vector<16x1xf32> to vector<16x16xf32>
    %208 = arith.mulf %203, %207 : vector<16x16xf32>
    %cst_146 = arith.constant dense<0.000000e+00> : vector<16x8xf32>
    %209 = tpu.matmul %208, %194, %cst_146 {dimension_numbers = #tpu.dot_dimension_numbers<[1], [0], [0], [1], [0, 0, 1, 1], [], []>} : vector<16x16xf32>, vector<16x8xf32>, vector<16x8xf32> -> vector<16x8xf32>
    %c0_147 = arith.constant 0 : index
    %c16 = arith.constant 16 : index
    %210 = vector.load %arg18[%c0_147, %c16] : memref<16x32xf32, #tpu.memory_space<vmem>>, vector<16x8xf32>
    tpu.vector_store %arg18[%c0_147, %c16], %209 {strides = array<i32>} : memref<16x32xf32, #tpu.memory_space<vmem>>, vector<16x8xf32>,
    %211 = vector.extract_strided_slice %157 {offsets = [0, 24], sizes = [16, 8], strides = [1, 1]} : vector<16x32xf32> to vector<16x8xf32>
    %212 = vector.extract_strided_slice %159 {offsets = [0, 24], sizes = [16, 8], strides = [1, 1]} : vector<16x32xf32> to vector<16x8xf32>
    %cst_148 = arith.constant dense<0.000000e+00> : vector<16x16xf32>
    %213 = tpu.matmul %212, %211, %cst_148 {dimension_numbers = #tpu.dot_dimension_numbers<[1], [1], [0], [0], [0, 0, 1, 0], [], []>} : vector<16x8xf32>, vector<16x8xf32>, vector<16x16xf32> -> vector<16x16xf32>
    %cst_149 = arith.constant -1.000000e+20 : f32
    %214 = vector.broadcast %cst_149 : f32 to vector<16x16xf32>
    %215 = arith.select %131, %214, %213 : vector<16x16xi1>, vector<16x16xf32>
    %cst_150 = arith.constant dense<0xFF800000> : vector<16xf32>
    %216 = vector.multi_reduction <maximumf>, %215, %cst_150 [1] : vector<16x16xf32> to vector<16xf32>
    %217 = vector.shape_cast %216 : vector<16xf32> to vector<16x1xf32>
    %218 = vector.broadcast %217 : vector<16x1xf32> to vector<16x16xf32>
    %219 = arith.subf %215, %218 : vector<16x16xf32>
    %220 = math.exp %219 : vector<16x16xf32>
    %cst_151 = arith.constant dense<0.000000e+00> : vector<16xf32>
    %221 = vector.multi_reduction <add>, %220, %cst_151 [1] : vector<16x16xf32> to vector<16xf32>
    %222 = vector.shape_cast %221 : vector<16xf32> to vector<16x1xf32>
    %223 = tpu.reciprocal %222 {approx = true} : vector<16x1xf32> -> vector<16x1xf32>
    %224 = vector.broadcast %223 : vector<16x1xf32> to vector<16x16xf32>
    %225 = arith.mulf %220, %224 : vector<16x16xf32>
    %cst_152 = arith.constant dense<0.000000e+00> : vector<16x8xf32>
    %226 = tpu.matmul %225, %211, %cst_152 {dimension_numbers = #tpu.dot_dimension_numbers<[1], [0], [0], [1], [0, 0, 1, 1], [], []>} : vector<16x16xf32>, vector<16x8xf32>, vector<16x8xf32> -> vector<16x8xf32>
    %c0_153 = arith.constant 0 : index
    %c24 = arith.constant 24 : index
    %227 = vector.load %arg18[%c0_153, %c24] : memref<16x32xf32, #tpu.memory_space<vmem>>, vector<16x8xf32>
    tpu.vector_store %arg18[%c0_153, %c24], %226 {strides = array<i32>} : memref<16x32xf32, #tpu.memory_space<vmem>>, vector<16x8xf32>,
    %c0_154 = arith.constant 0 : index
    %c0_155 = arith.constant 0 : index
    %228 = vector.load %arg18[%c0_154, %c0_155] : memref<16x32xf32, #tpu.memory_space<vmem>>, vector<16x32xf32>
    %c0_156 = arith.constant 0 : index
    %c0_157 = arith.constant 0 : index
    %c0_158 = arith.constant 0 : index
    %229 = vector.load %arg9[%c0_156, %c0_157, %c0_158] : memref<2x32x32xf32, #tpu.memory_space<vmem>>, vector<1x32x32xf32>
    %230 = vector.shape_cast %229 : vector<1x32x32xf32> to vector<32x32xf32>
    %cst_159 = arith.constant dense<0.000000e+00> : vector<16x32xf32>
    %231 = tpu.matmul %228, %230, %cst_159 {dimension_numbers = #tpu.dot_dimension_numbers<[1], [0], [0], [1], [0, 0, 1, 1], [], []>} : vector<16x32xf32>, vector<32x32xf32>, vector<16x32xf32> -> vector<16x32xf32>
    %c0_160 = arith.constant 0 : index
    %c0_161 = arith.constant 0 : index
    %c0_162 = arith.constant 0 : index
    %232 = vector.load %arg10[%c0_160, %c0_161, %c0_162] : memref<2x1x32xf32, #tpu.memory_space<vmem>>, vector<1x1x32xf32>
    %233 = vector.shape_cast %232 : vector<1x1x32xf32> to vector<1x32xf32>
    %234 = vector.broadcast %233 : vector<1x32xf32> to vector<16x32xf32>
    %235 = arith.addf %231, %234 : vector<16x32xf32>
    %236 = arith.addf %235, %128 : vector<16x32xf32>
    %c0_163 = arith.constant 0 : index
    %c0_164 = arith.constant 0 : index
    %c0_165 = arith.constant 0 : index
    %237 = vector.load %arg7[%c0_163, %c0_164, %c0_165] : memref<2x1x32xf32, #tpu.memory_space<vmem>>, vector<1x1x32xf32>
    %238 = vector.shape_cast %237 : vector<1x1x32xf32> to vector<1x32xf32>
    %c0_166 = arith.constant 0 : index
    %c0_167 = arith.constant 0 : index
    %c0_168 = arith.constant 0 : index
    %239 = vector.load %arg8[%c0_166, %c0_167, %c0_168] : memref<2x1x32xf32, #tpu.memory_space<vmem>>, vector<1x1x32xf32>
    %240 = vector.shape_cast %239 : vector<1x1x32xf32> to vector<1x32xf32>
    %cst_169 = arith.constant dense<0.000000e+00> : vector<16xf32>
    %241 = vector.multi_reduction <add>, %236, %cst_169 [1] : vector<16x32xf32> to vector<16xf32>
    %242 = vector.shape_cast %241 : vector<16xf32> to vector<16x1xf32>
    %cst_170 = arith.constant 3.200000e+01 : f32
    %243 = vector.broadcast %cst_170 : f32 to vector<16x1xf32>
    %244 = arith.divf %242, %243 : vector<16x1xf32>
    %245 = vector.broadcast %244 : vector<16x1xf32> to vector<16x32xf32>
    %246 = arith.subf %236, %245 : vector<16x32xf32>
    %247 = arith.mulf %246, %246 : vector<16x32xf32>
    %cst_171 = arith.constant dense<0.000000e+00> : vector<16xf32>
    %248 = vector.multi_reduction <add>, %247, %cst_171 [1] : vector<16x32xf32> to vector<16xf32>
    %249 = vector.shape_cast %248 : vector<16xf32> to vector<16x1xf32>
    %cst_172 = arith.constant 3.200000e+01 : f32
    %250 = vector.broadcast %cst_172 : f32 to vector<16x1xf32>
    %251 = arith.divf %249, %250 : vector<16x1xf32>
    %252 = vector.broadcast %244 : vector<16x1xf32> to vector<16x32xf32>
    %253 = arith.subf %236, %252 : vector<16x32xf32>
    %cst_173 = arith.constant 9.99999974E-6 : f32
    %254 = vector.broadcast %cst_173 : f32 to vector<16x1xf32>
    %255 = arith.addf %251, %254 : vector<16x1xf32>
    %256 = math.rsqrt %255 : vector<16x1xf32>
    %257 = vector.broadcast %256 : vector<16x1xf32> to vector<16x32xf32>
    %258 = arith.mulf %253, %257 : vector<16x32xf32>
    %259 = vector.broadcast %238 : vector<1x32xf32> to vector<16x32xf32>
    %260 = arith.mulf %258, %259 : vector<16x32xf32>
    %261 = vector.broadcast %240 : vector<1x32xf32> to vector<16x32xf32>
    %262 = arith.addf %260, %261 : vector<16x32xf32>
    %c0_174 = arith.constant 0 : index
    %c0_175 = arith.constant 0 : index
    %c0_176 = arith.constant 0 : index
    %263 = vector.load %arg11[%c0_174, %c0_175, %c0_176] : memref<2x32x64xf32, #tpu.memory_space<vmem>>, vector<1x32x64xf32>
    %264 = vector.shape_cast %263 : vector<1x32x64xf32> to vector<32x64xf32>
    %cst_177 = arith.constant dense<0.000000e+00> : vector<16x64xf32>
    %265 = tpu.matmul %262, %264, %cst_177 {dimension_numbers = #tpu.dot_dimension_numbers<[1], [0], [0], [1], [0, 0, 1, 1], [], []>} : vector<16x32xf32>, vector<32x64xf32>, vector<16x64xf32> -> vector<16x64xf32>
    %c0_178 = arith.constant 0 : index
    %c0_179 = arith.constant 0 : index
    %c0_180 = arith.constant 0 : index
    %266 = vector.load %arg12[%c0_178, %c0_179, %c0_180] : memref<2x1x64xf32, #tpu.memory_space<vmem>>, vector<1x1x64xf32>
    %267 = vector.shape_cast %266 : vector<1x1x64xf32> to vector<1x64xf32>
    %268 = vector.broadcast %267 : vector<1x64xf32> to vector<16x64xf32>
    %269 = arith.addf %265, %268 : vector<16x64xf32>
    %cst_181 = arith.constant 0.000000e+00 : f32
    %270 = vector.broadcast %cst_181 : f32 to vector<16x64xf32>
    %271 = arith.maximumf %269, %270 : vector<16x64xf32>
    %c0_182 = arith.constant 0 : index
    %c0_183 = arith.constant 0 : index
    %c0_184 = arith.constant 0 : index
    %272 = vector.load %arg13[%c0_182, %c0_183, %c0_184] : memref<2x64x32xf32, #tpu.memory_space<vmem>>, vector<1x64x32xf32>
    %273 = vector.shape_cast %272 : vector<1x64x32xf32> to vector<64x32xf32>
    %cst_185 = arith.constant dense<0.000000e+00> : vector<16x32xf32>
    %274 = tpu.matmul %271, %273, %cst_185 {dimension_numbers = #tpu.dot_dimension_numbers<[1], [0], [0], [1], [0, 0, 1, 1], [], []>} : vector<16x64xf32>, vector<64x32xf32>, vector<16x32xf32> -> vector<16x32xf32>
    %c0_186 = arith.constant 0 : index
    %c0_187 = arith.constant 0 : index
    %c0_188 = arith.constant 0 : index
    %275 = vector.load %arg14[%c0_186, %c0_187, %c0_188] : memref<2x1x32xf32, #tpu.memory_space<vmem>>, vector<1x1x32xf32>
    %276 = vector.shape_cast %275 : vector<1x1x32xf32> to vector<1x32xf32>
    %277 = vector.broadcast %276 : vector<1x32xf32> to vector<16x32xf32>
    %278 = arith.addf %274, %277 : vector<16x32xf32>
    %279 = arith.addf %278, %262 : vector<16x32xf32>
    %c1_189 = arith.constant 1 : index
    %c0_190 = arith.constant 0 : index
    %c0_191 = arith.constant 0 : index
    %280 = vector.load %arg5[%c1_189, %c0_190, %c0_191] : memref<2x1x32xf32, #tpu.memory_space<vmem>>, vector<1x1x32xf32>
    %281 = vector.shape_cast %280 : vector<1x1x32xf32> to vector<1x32xf32>
    %c1_192 = arith.constant 1 : index
    %c0_193 = arith.constant 0 : index
    %c0_194 = arith.constant 0 : index
    %282 = vector.load %arg6[%c1_192, %c0_193, %c0_194] : memref<2x1x32xf32, #tpu.memory_space<vmem>>, vector<1x1x32xf32>
    %283 = vector.shape_cast %282 : vector<1x1x32xf32> to vector<1x32xf32>
    %cst_195 = arith.constant dense<0.000000e+00> : vector<16xf32>
    %284 = vector.multi_reduction <add>, %279, %cst_195 [1] : vector<16x32xf32> to vector<16xf32>
    %285 = vector.shape_cast %284 : vector<16xf32> to vector<16x1xf32>
    %cst_196 = arith.constant 3.200000e+01 : f32
    %286 = vector.broadcast %cst_196 : f32 to vector<16x1xf32>
    %287 = arith.divf %285, %286 : vector<16x1xf32>
    %288 = vector.broadcast %287 : vector<16x1xf32> to vector<16x32xf32>
    %289 = arith.subf %279, %288 : vector<16x32xf32>
    %290 = arith.mulf %289, %289 : vector<16x32xf32>
    %cst_197 = arith.constant dense<0.000000e+00> : vector<16xf32>
    %291 = vector.multi_reduction <add>, %290, %cst_197 [1] : vector<16x32xf32> to vector<16xf32>
    %292 = vector.shape_cast %291 : vector<16xf32> to vector<16x1xf32>
    %cst_198 = arith.constant 3.200000e+01 : f32
    %293 = vector.broadcast %cst_198 : f32 to vector<16x1xf32>
    %294 = arith.divf %292, %293 : vector<16x1xf32>
    %295 = vector.broadcast %287 : vector<16x1xf32> to vector<16x32xf32>
    %296 = arith.subf %279, %295 : vector<16x32xf32>
    %cst_199 = arith.constant 9.99999974E-6 : f32
    %297 = vector.broadcast %cst_199 : f32 to vector<16x1xf32>
    %298 = arith.addf %294, %297 : vector<16x1xf32>
    %299 = math.rsqrt %298 : vector<16x1xf32>
    %300 = vector.broadcast %299 : vector<16x1xf32> to vector<16x32xf32>
    %301 = arith.mulf %296, %300 : vector<16x32xf32>
    %302 = vector.broadcast %281 : vector<1x32xf32> to vector<16x32xf32>
    %303 = arith.mulf %301, %302 : vector<16x32xf32>
    %304 = vector.broadcast %283 : vector<1x32xf32> to vector<16x32xf32>
    %305 = arith.addf %303, %304 : vector<16x32xf32>
    %cst_200 = arith.constant 0.176776692 : f32
    %306 = vector.broadcast %cst_200 : f32 to vector<16x32xf32>
    %307 = arith.mulf %305, %306 : vector<16x32xf32>
    %308 = vector.extract_strided_slice %305 {offsets = [0, 0], sizes = [16, 8], strides = [1, 1]} : vector<16x32xf32> to vector<16x8xf32>
    %309 = vector.extract_strided_slice %307 {offsets = [0, 0], sizes = [16, 8], strides = [1, 1]} : vector<16x32xf32> to vector<16x8xf32>
    %cst_201 = arith.constant dense<0.000000e+00> : vector<16x16xf32>
    %310 = tpu.matmul %309, %308, %cst_201 {dimension_numbers = #tpu.dot_dimension_numbers<[1], [1], [0], [0], [0, 0, 1, 0], [], []>} : vector<16x8xf32>, vector<16x8xf32>, vector<16x16xf32> -> vector<16x16xf32>
    %cst_202 = arith.constant -1.000000e+20 : f32
    %311 = vector.broadcast %cst_202 : f32 to vector<16x16xf32>
    %312 = arith.select %131, %311, %310 : vector<16x16xi1>, vector<16x16xf32>
    %cst_203 = arith.constant dense<0xFF800000> : vector<16xf32>
    %313 = vector.multi_reduction <maximumf>, %312, %cst_203 [1] : vector<16x16xf32> to vector<16xf32>
    %314 = vector.shape_cast %313 : vector<16xf32> to vector<16x1xf32>
    %315 = vector.broadcast %314 : vector<16x1xf32> to vector<16x16xf32>
    %316 = arith.subf %312, %315 : vector<16x16xf32>
    %317 = math.exp %316 : vector<16x16xf32>
    %cst_204 = arith.constant dense<0.000000e+00> : vector<16xf32>
    %318 = vector.multi_reduction <add>, %317, %cst_204 [1] : vector<16x16xf32> to vector<16xf32>
    %319 = vector.shape_cast %318 : vector<16xf32> to vector<16x1xf32>
    %320 = tpu.reciprocal %319 {approx = true} : vector<16x1xf32> -> vector<16x1xf32>
    %321 = vector.broadcast %320 : vector<16x1xf32> to vector<16x16xf32>
    %322 = arith.mulf %317, %321 : vector<16x16xf32>
    %cst_205 = arith.constant dense<0.000000e+00> : vector<16x8xf32>
    %323 = tpu.matmul %322, %308, %cst_205 {dimension_numbers = #tpu.dot_dimension_numbers<[1], [0], [0], [1], [0, 0, 1, 1], [], []>} : vector<16x16xf32>, vector<16x8xf32>, vector<16x8xf32> -> vector<16x8xf32>
    %c0_206 = arith.constant 0 : index
    %c0_207 = arith.constant 0 : index
    %324 = vector.load %arg18[%c0_206, %c0_207] : memref<16x32xf32, #tpu.memory_space<vmem>>, vector<16x8xf32>
    tpu.vector_store %arg18[%c0_206, %c0_207], %323 {strides = array<i32>} : memref<16x32xf32, #tpu.memory_space<vmem>>, vector<16x8xf32>,
    %325 = vector.extract_strided_slice %305 {offsets = [0, 8], sizes = [16, 8], strides = [1, 1]} : vector<16x32xf32> to vector<16x8xf32>
    %326 = vector.extract_strided_slice %307 {offsets = [0, 8], sizes = [16, 8], strides = [1, 1]} : vector<16x32xf32> to vector<16x8xf32>
    %cst_208 = arith.constant dense<0.000000e+00> : vector<16x16xf32>
    %327 = tpu.matmul %326, %325, %cst_208 {dimension_numbers = #tpu.dot_dimension_numbers<[1], [1], [0], [0], [0, 0, 1, 0], [], []>} : vector<16x8xf32>, vector<16x8xf32>, vector<16x16xf32> -> vector<16x16xf32>
    %cst_209 = arith.constant -1.000000e+20 : f32
    %328 = vector.broadcast %cst_209 : f32 to vector<16x16xf32>
    %329 = arith.select %131, %328, %327 : vector<16x16xi1>, vector<16x16xf32>
    %cst_210 = arith.constant dense<0xFF800000> : vector<16xf32>
    %330 = vector.multi_reduction <maximumf>, %329, %cst_210 [1] : vector<16x16xf32> to vector<16xf32>
    %331 = vector.shape_cast %330 : vector<16xf32> to vector<16x1xf32>
    %332 = vector.broadcast %331 : vector<16x1xf32> to vector<16x16xf32>
    %333 = arith.subf %329, %332 : vector<16x16xf32>
    %334 = math.exp %333 : vector<16x16xf32>
    %cst_211 = arith.constant dense<0.000000e+00> : vector<16xf32>
    %335 = vector.multi_reduction <add>, %334, %cst_211 [1] : vector<16x16xf32> to vector<16xf32>
    %336 = vector.shape_cast %335 : vector<16xf32> to vector<16x1xf32>
    %337 = tpu.reciprocal %336 {approx = true} : vector<16x1xf32> -> vector<16x1xf32>
    %338 = vector.broadcast %337 : vector<16x1xf32> to vector<16x16xf32>
    %339 = arith.mulf %334, %338 : vector<16x16xf32>
    %cst_212 = arith.constant dense<0.000000e+00> : vector<16x8xf32>
    %340 = tpu.matmul %339, %325, %cst_212 {dimension_numbers = #tpu.dot_dimension_numbers<[1], [0], [0], [1], [0, 0, 1, 1], [], []>} : vector<16x16xf32>, vector<16x8xf32>, vector<16x8xf32> -> vector<16x8xf32>
    %c0_213 = arith.constant 0 : index
    %c8_214 = arith.constant 8 : index
    %341 = vector.load %arg18[%c0_213, %c8_214] : memref<16x32xf32, #tpu.memory_space<vmem>>, vector<16x8xf32>
    tpu.vector_store %arg18[%c0_213, %c8_214], %340 {strides = array<i32>} : memref<16x32xf32, #tpu.memory_space<vmem>>, vector<16x8xf32>,
    %342 = vector.extract_strided_slice %305 {offsets = [0, 16], sizes = [16, 8], strides = [1, 1]} : vector<16x32xf32> to vector<16x8xf32>
    %343 = vector.extract_strided_slice %307 {offsets = [0, 16], sizes = [16, 8], strides = [1, 1]} : vector<16x32xf32> to vector<16x8xf32>
    %cst_215 = arith.constant dense<0.000000e+00> : vector<16x16xf32>
    %344 = tpu.matmul %343, %342, %cst_215 {dimension_numbers = #tpu.dot_dimension_numbers<[1], [1], [0], [0], [0, 0, 1, 0], [], []>} : vector<16x8xf32>, vector<16x8xf32>, vector<16x16xf32> -> vector<16x16xf32>
    %cst_216 = arith.constant -1.000000e+20 : f32
    %345 = vector.broadcast %cst_216 : f32 to vector<16x16xf32>
    %346 = arith.select %131, %345, %344 : vector<16x16xi1>, vector<16x16xf32>
    %cst_217 = arith.constant dense<0xFF800000> : vector<16xf32>
    %347 = vector.multi_reduction <maximumf>, %346, %cst_217 [1] : vector<16x16xf32> to vector<16xf32>
    %348 = vector.shape_cast %347 : vector<16xf32> to vector<16x1xf32>
    %349 = vector.broadcast %348 : vector<16x1xf32> to vector<16x16xf32>
    %350 = arith.subf %346, %349 : vector<16x16xf32>
    %351 = math.exp %350 : vector<16x16xf32>
    %cst_218 = arith.constant dense<0.000000e+00> : vector<16xf32>
    %352 = vector.multi_reduction <add>, %351, %cst_218 [1] : vector<16x16xf32> to vector<16xf32>
    %353 = vector.shape_cast %352 : vector<16xf32> to vector<16x1xf32>
    %354 = tpu.reciprocal %353 {approx = true} : vector<16x1xf32> -> vector<16x1xf32>
    %355 = vector.broadcast %354 : vector<16x1xf32> to vector<16x16xf32>
    %356 = arith.mulf %351, %355 : vector<16x16xf32>
    %cst_219 = arith.constant dense<0.000000e+00> : vector<16x8xf32>
    %357 = tpu.matmul %356, %342, %cst_219 {dimension_numbers = #tpu.dot_dimension_numbers<[1], [0], [0], [1], [0, 0, 1, 1], [], []>} : vector<16x16xf32>, vector<16x8xf32>, vector<16x8xf32> -> vector<16x8xf32>
    %c0_220 = arith.constant 0 : index
    %c16_221 = arith.constant 16 : index
    %358 = vector.load %arg18[%c0_220, %c16_221] : memref<16x32xf32, #tpu.memory_space<vmem>>, vector<16x8xf32>
    tpu.vector_store %arg18[%c0_220, %c16_221], %357 {strides = array<i32>} : memref<16x32xf32, #tpu.memory_space<vmem>>, vector<16x8xf32>,
    %359 = vector.extract_strided_slice %305 {offsets = [0, 24], sizes = [16, 8], strides = [1, 1]} : vector<16x32xf32> to vector<16x8xf32>
    %360 = vector.extract_strided_slice %307 {offsets = [0, 24], sizes = [16, 8], strides = [1, 1]} : vector<16x32xf32> to vector<16x8xf32>
    %cst_222 = arith.constant dense<0.000000e+00> : vector<16x16xf32>
    %361 = tpu.matmul %360, %359, %cst_222 {dimension_numbers = #tpu.dot_dimension_numbers<[1], [1], [0], [0], [0, 0, 1, 0], [], []>} : vector<16x8xf32>, vector<16x8xf32>, vector<16x16xf32> -> vector<16x16xf32>
    %cst_223 = arith.constant -1.000000e+20 : f32
    %362 = vector.broadcast %cst_223 : f32 to vector<16x16xf32>
    %363 = arith.select %131, %362, %361 : vector<16x16xi1>, vector<16x16xf32>
    %cst_224 = arith.constant dense<0xFF800000> : vector<16xf32>
    %364 = vector.multi_reduction <maximumf>, %363, %cst_224 [1] : vector<16x16xf32> to vector<16xf32>
    %365 = vector.shape_cast %364 : vector<16xf32> to vector<16x1xf32>
    %366 = vector.broadcast %365 : vector<16x1xf32> to vector<16x16xf32>
    %367 = arith.subf %363, %366 : vector<16x16xf32>
    %368 = math.exp %367 : vector<16x16xf32>
    %cst_225 = arith.constant dense<0.000000e+00> : vector<16xf32>
    %369 = vector.multi_reduction <add>, %368, %cst_225 [1] : vector<16x16xf32> to vector<16xf32>
    %370 = vector.shape_cast %369 : vector<16xf32> to vector<16x1xf32>
    %371 = tpu.reciprocal %370 {approx = true} : vector<16x1xf32> -> vector<16x1xf32>
    %372 = vector.broadcast %371 : vector<16x1xf32> to vector<16x16xf32>
    %373 = arith.mulf %368, %372 : vector<16x16xf32>
    %cst_226 = arith.constant dense<0.000000e+00> : vector<16x8xf32>
    %374 = tpu.matmul %373, %359, %cst_226 {dimension_numbers = #tpu.dot_dimension_numbers<[1], [0], [0], [1], [0, 0, 1, 1], [], []>} : vector<16x16xf32>, vector<16x8xf32>, vector<16x8xf32> -> vector<16x8xf32>
    %c0_227 = arith.constant 0 : index
    %c24_228 = arith.constant 24 : index
    %375 = vector.load %arg18[%c0_227, %c24_228] : memref<16x32xf32, #tpu.memory_space<vmem>>, vector<16x8xf32>
    tpu.vector_store %arg18[%c0_227, %c24_228], %374 {strides = array<i32>} : memref<16x32xf32, #tpu.memory_space<vmem>>, vector<16x8xf32>,
    %c0_229 = arith.constant 0 : index
    %c0_230 = arith.constant 0 : index
    %376 = vector.load %arg18[%c0_229, %c0_230] : memref<16x32xf32, #tpu.memory_space<vmem>>, vector<16x32xf32>
    %c1_231 = arith.constant 1 : index
    %c0_232 = arith.constant 0 : index
    %c0_233 = arith.constant 0 : index
    %377 = vector.load %arg9[%c1_231, %c0_232, %c0_233] : memref<2x32x32xf32, #tpu.memory_space<vmem>>, vector<1x32x32xf32>
    %378 = vector.shape_cast %377 : vector<1x32x32xf32> to vector<32x32xf32>
    %cst_234 = arith.constant dense<0.000000e+00> : vector<16x32xf32>
    %379 = tpu.matmul %376, %378, %cst_234 {dimension_numbers = #tpu.dot_dimension_numbers<[1], [0], [0], [1], [0, 0, 1, 1], [], []>} : vector<16x32xf32>, vector<32x32xf32>, vector<16x32xf32> -> vector<16x32xf32>
    %c1_235 = arith.constant 1 : index
    %c0_236 = arith.constant 0 : index
    %c0_237 = arith.constant 0 : index
    %380 = vector.load %arg10[%c1_235, %c0_236, %c0_237] : memref<2x1x32xf32, #tpu.memory_space<vmem>>, vector<1x1x32xf32>
    %381 = vector.shape_cast %380 : vector<1x1x32xf32> to vector<1x32xf32>
    %382 = vector.broadcast %381 : vector<1x32xf32> to vector<16x32xf32>
    %383 = arith.addf %379, %382 : vector<16x32xf32>
    %384 = arith.addf %383, %279 : vector<16x32xf32>
    %c1_238 = arith.constant 1 : index
    %c0_239 = arith.constant 0 : index
    %c0_240 = arith.constant 0 : index
    %385 = vector.load %arg7[%c1_238, %c0_239, %c0_240] : memref<2x1x32xf32, #tpu.memory_space<vmem>>, vector<1x1x32xf32>
    %386 = vector.shape_cast %385 : vector<1x1x32xf32> to vector<1x32xf32>
    %c1_241 = arith.constant 1 : index
    %c0_242 = arith.constant 0 : index
    %c0_243 = arith.constant 0 : index
    %387 = vector.load %arg8[%c1_241, %c0_242, %c0_243] : memref<2x1x32xf32, #tpu.memory_space<vmem>>, vector<1x1x32xf32>
    %388 = vector.shape_cast %387 : vector<1x1x32xf32> to vector<1x32xf32>
    %cst_244 = arith.constant dense<0.000000e+00> : vector<16xf32>
    %389 = vector.multi_reduction <add>, %384, %cst_244 [1] : vector<16x32xf32> to vector<16xf32>
    %390 = vector.shape_cast %389 : vector<16xf32> to vector<16x1xf32>
    %cst_245 = arith.constant 3.200000e+01 : f32
    %391 = vector.broadcast %cst_245 : f32 to vector<16x1xf32>
    %392 = arith.divf %390, %391 : vector<16x1xf32>
    %393 = vector.broadcast %392 : vector<16x1xf32> to vector<16x32xf32>
    %394 = arith.subf %384, %393 : vector<16x32xf32>
    %395 = arith.mulf %394, %394 : vector<16x32xf32>
    %cst_246 = arith.constant dense<0.000000e+00> : vector<16xf32>
    %396 = vector.multi_reduction <add>, %395, %cst_246 [1] : vector<16x32xf32> to vector<16xf32>
    %397 = vector.shape_cast %396 : vector<16xf32> to vector<16x1xf32>
    %cst_247 = arith.constant 3.200000e+01 : f32
    %398 = vector.broadcast %cst_247 : f32 to vector<16x1xf32>
    %399 = arith.divf %397, %398 : vector<16x1xf32>
    %400 = vector.broadcast %392 : vector<16x1xf32> to vector<16x32xf32>
    %401 = arith.subf %384, %400 : vector<16x32xf32>
    %cst_248 = arith.constant 9.99999974E-6 : f32
    %402 = vector.broadcast %cst_248 : f32 to vector<16x1xf32>
    %403 = arith.addf %399, %402 : vector<16x1xf32>
    %404 = math.rsqrt %403 : vector<16x1xf32>
    %405 = vector.broadcast %404 : vector<16x1xf32> to vector<16x32xf32>
    %406 = arith.mulf %401, %405 : vector<16x32xf32>
    %407 = vector.broadcast %386 : vector<1x32xf32> to vector<16x32xf32>
    %408 = arith.mulf %406, %407 : vector<16x32xf32>
    %409 = vector.broadcast %388 : vector<1x32xf32> to vector<16x32xf32>
    %410 = arith.addf %408, %409 : vector<16x32xf32>
    %c1_249 = arith.constant 1 : index
    %c0_250 = arith.constant 0 : index
    %c0_251 = arith.constant 0 : index
    %411 = vector.load %arg11[%c1_249, %c0_250, %c0_251] : memref<2x32x64xf32, #tpu.memory_space<vmem>>, vector<1x32x64xf32>
    %412 = vector.shape_cast %411 : vector<1x32x64xf32> to vector<32x64xf32>
    %cst_252 = arith.constant dense<0.000000e+00> : vector<16x64xf32>
    %413 = tpu.matmul %410, %412, %cst_252 {dimension_numbers = #tpu.dot_dimension_numbers<[1], [0], [0], [1], [0, 0, 1, 1], [], []>} : vector<16x32xf32>, vector<32x64xf32>, vector<16x64xf32> -> vector<16x64xf32>
    %c1_253 = arith.constant 1 : index
    %c0_254 = arith.constant 0 : index
    %c0_255 = arith.constant 0 : index
    %414 = vector.load %arg12[%c1_253, %c0_254, %c0_255] : memref<2x1x64xf32, #tpu.memory_space<vmem>>, vector<1x1x64xf32>
    %415 = vector.shape_cast %414 : vector<1x1x64xf32> to vector<1x64xf32>
    %416 = vector.broadcast %415 : vector<1x64xf32> to vector<16x64xf32>
    %417 = arith.addf %413, %416 : vector<16x64xf32>
    %cst_256 = arith.constant 0.000000e+00 : f32
    %418 = vector.broadcast %cst_256 : f32 to vector<16x64xf32>
    %419 = arith.maximumf %417, %418 : vector<16x64xf32>
    %c1_257 = arith.constant 1 : index
    %c0_258 = arith.constant 0 : index
    %c0_259 = arith.constant 0 : index
    %420 = vector.load %arg13[%c1_257, %c0_258, %c0_259] : memref<2x64x32xf32, #tpu.memory_space<vmem>>, vector<1x64x32xf32>
    %421 = vector.shape_cast %420 : vector<1x64x32xf32> to vector<64x32xf32>
    %cst_260 = arith.constant dense<0.000000e+00> : vector<16x32xf32>
    %422 = tpu.matmul %419, %421, %cst_260 {dimension_numbers = #tpu.dot_dimension_numbers<[1], [0], [0], [1], [0, 0, 1, 1], [], []>} : vector<16x64xf32>, vector<64x32xf32>, vector<16x32xf32> -> vector<16x32xf32>
    %c1_261 = arith.constant 1 : index
    %c0_262 = arith.constant 0 : index
    %c0_263 = arith.constant 0 : index
    %423 = vector.load %arg14[%c1_261, %c0_262, %c0_263] : memref<2x1x32xf32, #tpu.memory_space<vmem>>, vector<1x1x32xf32>
    %424 = vector.shape_cast %423 : vector<1x1x32xf32> to vector<1x32xf32>
    %425 = vector.broadcast %424 : vector<1x32xf32> to vector<16x32xf32>
    %426 = arith.addf %422, %425 : vector<16x32xf32>
    %427 = arith.addf %426, %410 : vector<16x32xf32>
    %c0_264 = arith.constant 0 : index
    %c0_265 = arith.constant 0 : index
    %428 = vector.load %arg15[%c0_264, %c0_265] : memref<32x128xf32, #tpu.memory_space<vmem>>, vector<32x128xf32>
    %cst_266 = arith.constant dense<0.000000e+00> : vector<16x128xf32>
    %429 = tpu.matmul %427, %428, %cst_266 {dimension_numbers = #tpu.dot_dimension_numbers<[1], [0], [0], [1], [0, 0, 1, 1], [], []>} : vector<16x32xf32>, vector<32x128xf32>, vector<16x128xf32> -> vector<16x128xf32>
    %c0_267 = arith.constant 0 : index
    %c0_268 = arith.constant 0 : index
    %430 = vector.load %arg16[%c0_267, %c0_268] : memref<1x128xf32, #tpu.memory_space<vmem>>, vector<1x128xf32>
    %431 = vector.broadcast %430 : vector<1x128xf32> to vector<16x128xf32>
    %432 = arith.addf %429, %431 : vector<16x128xf32>
    %c0_269 = arith.constant 0 : index
    %c0_270 = arith.constant 0 : index
    %433 = vector.load %arg17[%c0_269, %c0_270] : memref<16x128xf32, #tpu.memory_space<vmem>>, vector<16x128xf32>
    tpu.vector_store %arg17[%c0_269, %c0_270], %432 {strides = array<i32>} : memref<16x128xf32, #tpu.memory_space<vmem>>, vector<16x128xf32>,
    return
  }
  func.func @transform_0(%arg0: i32, %arg1: memref<16xi32, #tpu.memory_space<smem>>) -> (i32, i32) {
    %c0_i32 = arith.constant 0 : i32
    %c0_i32_0 = arith.constant 0 : i32
    %c0_i32_1 = arith.constant 0 : i32
    return %c0_i32, %c0_i32_0 : i32, i32
  }
  func.func @transform_1(%arg0: i32, %arg1: memref<16xi32, #tpu.memory_space<smem>>) -> (i32, i32, i32) {
    %c0_i32 = arith.constant 0 : i32
    %c0_i32_0 = arith.constant 0 : i32
    %c0_i32_1 = arith.constant 0 : i32
    %c0_i32_2 = arith.constant 0 : i32
    return %c0_i32, %c0_i32_0, %c0_i32_1 : i32, i32, i32
  }
  func.func @transform_2(%arg0: i32, %arg1: memref<16xi32, #tpu.memory_space<smem>>) -> (i32, i32, i32) {
    %c0_i32 = arith.constant 0 : i32
    %c0_i32_0 = arith.constant 0 : i32
    %c0_i32_1 = arith.constant 0 : i32
    %c0_i32_2 = arith.constant 0 : i32
    return %c0_i32, %c0_i32_0, %c0_i32_1 : i32, i32, i32
  }
  func.func @transform_3(%arg0: i32, %arg1: memref<16xi32, #tpu.memory_space<smem>>) -> (i32, i32, i32) {
    %c0_i32 = arith.constant 0 : i32
    %c0_i32_0 = arith.constant 0 : i32
    %c0_i32_1 = arith.constant 0 : i32
    %c0_i32_2 = arith.constant 0 : i32
    return %c0_i32, %c0_i32_0, %c0_i32_1 : i32, i32, i32
  }
  func.func @transform_4(%arg0: i32, %arg1: memref<16xi32, #tpu.memory_space<smem>>) -> (i32, i32, i32) {
    %c0_i32 = arith.constant 0 : i32
    %c0_i32_0 = arith.constant 0 : i32
    %c0_i32_1 = arith.constant 0 : i32
    %c0_i32_2 = arith.constant 0 : i32
    return %c0_i32, %c0_i32_0, %c0_i32_1 : i32, i32, i32
  }
  func.func @transform_5(%arg0: i32, %arg1: memref<16xi32, #tpu.memory_space<smem>>) -> (i32, i32, i32) {
    %c0_i32 = arith.constant 0 : i32
    %c0_i32_0 = arith.constant 0 : i32
    %c0_i32_1 = arith.constant 0 : i32
    %c0_i32_2 = arith.constant 0 : i32
    return %c0_i32, %c0_i32_0, %c0_i32_1 : i32, i32, i32
  }
  func.func @transform_6(%arg0: i32, %arg1: memref<16xi32, #tpu.memory_space<smem>>) -> (i32, i32, i32) {
    %c0_i32 = arith.constant 0 : i32
    %c0_i32_0 = arith.constant 0 : i32
    %c0_i32_1 = arith.constant 0 : i32
    %c0_i32_2 = arith.constant 0 : i32
    return %c0_i32, %c0_i32_0, %c0_i32_1 : i32, i32, i32
  }
  func.func @transform_7(%arg0: i32, %arg1: memref<16xi32, #tpu.memory_space<smem>>) -> (i32, i32, i32) {
    %c0_i32 = arith.constant 0 : i32
    %c0_i32_0 = arith.constant 0 : i32
    %c0_i32_1 = arith.constant 0 : i32
    %c0_i32_2 = arith.constant 0 : i32
    return %c0_i32, %c0_i32_0, %c0_i32_1 : i32, i32, i32
  }
  func.func @transform_8(%arg0: i32, %arg1: memref<16xi32, #tpu.memory_space<smem>>) -> (i32, i32, i32) {
    %c0_i32 = arith.constant 0 : i32
    %c0_i32_0 = arith.constant 0 : i32
    %c0_i32_1 = arith.constant 0 : i32
    %c0_i32_2 = arith.constant 0 : i32
    return %c0_i32, %c0_i32_0, %c0_i32_1 : i32, i32, i32
  }
  func.func @transform_9(%arg0: i32, %arg1: memref<16xi32, #tpu.memory_space<smem>>) -> (i32, i32, i32) {
    %c0_i32 = arith.constant 0 : i32
    %c0_i32_0 = arith.constant 0 : i32
    %c0_i32_1 = arith.constant 0 : i32
    %c0_i32_2 = arith.constant 0 : i32
    return %c0_i32, %c0_i32_0, %c0_i32_1 : i32, i32, i32
  }
  func.func @transform_10(%arg0: i32, %arg1: memref<16xi32, #tpu.memory_space<smem>>) -> (i32, i32, i32) {
    %c0_i32 = arith.constant 0 : i32
    %c0_i32_0 = arith.constant 0 : i32
    %c0_i32_1 = arith.constant 0 : i32
    %c0_i32_2 = arith.constant 0 : i32
    return %c0_i32, %c0_i32_0, %c0_i32_1 : i32, i32, i32
  }
  func.func @transform_11(%arg0: i32, %arg1: memref<16xi32, #tpu.memory_space<smem>>) -> (i32, i32, i32) {
    %c0_i32 = arith.constant 0 : i32
    %c0_i32_0 = arith.constant 0 : i32
    %c0_i32_1 = arith.constant 0 : i32
    %c0_i32_2 = arith.constant 0 : i32
    return %c0_i32, %c0_i32_0, %c0_i32_1 : i32, i32, i32
  }
  func.func @transform_12(%arg0: i32, %arg1: memref<16xi32, #tpu.memory_space<smem>>) -> (i32, i32, i32) {
    %c0_i32 = arith.constant 0 : i32
    %c0_i32_0 = arith.constant 0 : i32
    %c0_i32_1 = arith.constant 0 : i32
    %c0_i32_2 = arith.constant 0 : i32
    return %c0_i32, %c0_i32_0, %c0_i32_1 : i32, i32, i32
  }
  func.func @transform_13(%arg0: i32, %arg1: memref<16xi32, #tpu.memory_space<smem>>) -> (i32, i32) {
    %c0_i32 = arith.constant 0 : i32
    %c0_i32_0 = arith.constant 0 : i32
    %c0_i32_1 = arith.constant 0 : i32
    return %c0_i32, %c0_i32_0 : i32, i32
  }
  func.func @transform_14(%arg0: i32, %arg1: memref<16xi32, #tpu.memory_space<smem>>) -> (i32, i32) {
    %c0_i32 = arith.constant 0 : i32
    %c0_i32_0 = arith.constant 0 : i32
    %c0_i32_1 = arith.constant 0 : i32
    return %c0_i32, %c0_i32_0 : i32, i32
  }
  func.func @transform_15(%arg0: i32, %arg1: memref<16xi32, #tpu.memory_space<smem>>) -> (i32, i32) {
    %c0_i32 = arith.constant 0 : i32
    %c0_i32_0 = arith.constant 0 : i32
    %c0_i32_1 = arith.constant 0 : i32
    return %c0_i32, %c0_i32_0 : i32, i32
  }
}

</mosaic_0001>

<llo_original>
// kernel: tpu_custom_call.1
$region0: #{tpu_custom_call.1}
  #allocation0 [shape = 'u32[]', space=smem, size = 0x4, offset = 0x4, fixed_abs, tag = 'smem constant byte address 0x4 - core index']
  #allocation1 [shape = 'u32[72,128]{1,0:T(1,128)}', space=vmem, size = 0x9000, scoped, tag = 'internal scratch']
  #allocation2 [shape = 'f32[16,32]{1,0:T(8,128)}', space=vmem, size = 0x2000, scoped, tag = 'scratch operand']
  #allocation3 [shape = 's32[1]{0}', space=sflag, size = 0x4, scoped, tag = 'scoped memory for tpu_custom_call.1']
  #allocation4 [shape = 'u8[512]{0}', space=smem, size = 0x200, scoped, tag = 'prefetched SMEM operand 0']
  %s0 = inlined_call_operand.vmem [shape: s32[16], index: 0, kind: input, shape index: {}]
  %s1 = inlined_call_operand.vmem [shape: f32[16,16], index: 1, kind: input, shape index: {}]
  %s2 = inlined_call_operand.vmem [shape: f32[2,1,32], index: 2, kind: input, shape index: {}]
  %s3 = inlined_call_operand.vmem [shape: f32[64,1,32], index: 3, kind: input, shape index: {}]
  %s4 = inlined_call_operand.vmem [shape: f32[2,1,32], index: 4, kind: input, shape index: {}]
  %s5 = inlined_call_operand.vmem [shape: f32[2,1,32], index: 5, kind: input, shape index: {}]
  %s6 = inlined_call_operand.vmem [shape: f32[2,1,32], index: 6, kind: input, shape index: {}]
  %s7 = inlined_call_operand.vmem [shape: f32[2,1,32], index: 7, kind: input, shape index: {}]
  %s8 = inlined_call_operand.vmem [shape: f32[2,32,32], index: 8, kind: input, shape index: {}]
  %s9 = inlined_call_operand.vmem [shape: f32[2,1,32], index: 9, kind: input, shape index: {}]
  %s10 = inlined_call_operand.vmem [shape: f32[2,32,64], index: 10, kind: input, shape index: {}]
  %s11 = inlined_call_operand.vmem [shape: f32[2,1,64], index: 11, kind: input, shape index: {}]
  %s12 = inlined_call_operand.vmem [shape: f32[2,64,32], index: 12, kind: input, shape index: {}]
  %s13 = inlined_call_operand.vmem [shape: f32[2,1,32], index: 13, kind: input, shape index: {}]
  %s14 = inlined_call_operand.vmem [shape: f32[32,128], index: 14, kind: input, shape index: {}]
  %s15 = inlined_call_operand.vmem [shape: f32[1,128], index: 15, kind: input, shape index: {}]
  %s16 = inlined_call_operand.hbm [shape: f32[16,128], index: 16, kind: output, shape index: {}]
  %s17 = sld [smem:[#allocation0]]
  $region70: #{tpu_custom_call.1} parent=0
    _
  %s19 = ssub.s32 1, %s17
  %s20 = scalar_select 0, %s19, %s17
  %s22 = sshll.u32 %s0, 4
  %s23 = int_to_ptr.vmem [resolvable:$true] %s22
  %25 = dma.vmem_to_smem %s23, 16, [#allocation4], [#allocation3]
  %27 = dma.done [#allocation3], 16
  %28 = sfence
  $region1: #{tpu_custom_call.1} parent=0
    #allocation5 [shape = 'u8[8192]{0}', space=vmem, size = 0x2000, scoped, tag = 'output window, operand 0, single buffered']
    #allocation6 [shape = 's32[1]{0}', space=sflag, size = 0x4, scoped, tag = 'scoped memory for tpu_custom_call.1']
    %29 = vsyncpa [#allocation6], 0
    // Predicated region
    $region2: #{tpu_custom_call.1} parent=1 // pred_check
      _
    $region3: #{tpu_custom_call.1} parent=1 // pred_check_branch
      %31 = sbr.rel (0) target = $region5
    $region4: #{tpu_custom_call.1} parent=1 // pred_region
      _
    $region5: #{tpu_custom_call.1} parent=1 // pred_fallthru
      _
    // Predicated region
    $region6: #{tpu_custom_call.1} parent=1 // pred_check
      _
    $region7: #{tpu_custom_call.1} parent=1 // pred_check_branch
      %33 = sbr.rel (0) target = $region9
    $region8: #{tpu_custom_call.1} parent=1 // pred_region
      _
    $region9: #{tpu_custom_call.1} parent=1 // pred_fallthru
      _
    // Predicated region
    $region10: #{tpu_custom_call.1} parent=1 // pred_check
      _
    $region11: #{tpu_custom_call.1} parent=1 // pred_check_branch
      %35 = sbr.rel (0) target = $region13
    $region12: #{tpu_custom_call.1} parent=1 // pred_region
      _
    $region13: #{tpu_custom_call.1} parent=1 // pred_fallthru
      _
    // Predicated region
    $region14: #{tpu_custom_call.1} parent=1 // pred_check
      _
    $region15: #{tpu_custom_call.1} parent=1 // pred_check_branch
      %37 = sbr.rel (0) target = $region17
    $region16: #{tpu_custom_call.1} parent=1 // pred_region
      _
    $region17: #{tpu_custom_call.1} parent=1 // pred_fallthru
      _
    // Predicated region
    $region18: #{tpu_custom_call.1} parent=1 // pred_check
      _
    $region19: #{tpu_custom_call.1} parent=1 // pred_check_branch
      %39 = sbr.rel (0) target = $region21
    $region20: #{tpu_custom_call.1} parent=1 // pred_region
      _
    $region21: #{tpu_custom_call.1} parent=1 // pred_fallthru
      _
    // Predicated region
    $region22: #{tpu_custom_call.1} parent=1 // pred_check
      _
    $region23: #{tpu_custom_call.1} parent=1 // pred_check_branch
      %41 = sbr.rel (0) target = $region25
    $region24: #{tpu_custom_call.1} parent=1 // pred_region
      _
    $region25: #{tpu_custom_call.1} parent=1 // pred_fallthru
      _
    // Predicated region
    $region26: #{tpu_custom_call.1} parent=1 // pred_check
      _
    $region27: #{tpu_custom_call.1} parent=1 // pred_check_branch
      %43 = sbr.rel (0) target = $region29
    $region28: #{tpu_custom_call.1} parent=1 // pred_region
      _
    $region29: #{tpu_custom_call.1} parent=1 // pred_fallthru
      _
    // Predicated region
    $region30: #{tpu_custom_call.1} parent=1 // pred_check
      _
    $region31: #{tpu_custom_call.1} parent=1 // pred_check_branch
      %45 = sbr.rel (0) target = $region33
    $region32: #{tpu_custom_call.1} parent=1 // pred_region
      _
    $region33: #{tpu_custom_call.1} parent=1 // pred_fallthru
      _
    // Predicated region
    $region34: #{tpu_custom_call.1} parent=1 // pred_check
      _
    $region35: #{tpu_custom_call.1} parent=1 // pred_check_branch
      %47 = sbr.rel (0) target = $region37
    $region36: #{tpu_custom_call.1} parent=1 // pred_region
      _
    $region37: #{tpu_custom_call.1} parent=1 // pred_fallthru
      _
    // Predicated region
    $region38: #{tpu_custom_call.1} parent=1 // pred_check
      _
    $region39: #{tpu_custom_call.1} parent=1 // pred_check_branch
      %49 = sbr.rel (0) target = $region41
    $region40: #{tpu_custom_call.1} parent=1 // pred_region
      _
    $region41: #{tpu_custom_call.1} parent=1 // pred_fallthru
      _
    // Predicated region
    $region42: #{tpu_custom_call.1} parent=1 // pred_check
      _
    $region43: #{tpu_custom_call.1} parent=1 // pred_check_branch
      %51 = sbr.rel (0) target = $region45
    $region44: #{tpu_custom_call.1} parent=1 // pred_region
      _
    $region45: #{tpu_custom_call.1} parent=1 // pred_fallthru
      _
    // Predicated region
    $region46: #{tpu_custom_call.1} parent=1 // pred_check
      _
    $region47: #{tpu_custom_call.1} parent=1 // pred_check_branch
      %53 = sbr.rel (0) target = $region49
    $region48: #{tpu_custom_call.1} parent=1 // pred_region
      _
    $region49: #{tpu_custom_call.1} parent=1 // pred_fallthru
      _
    // Predicated region
    $region50: #{tpu_custom_call.1} parent=1 // pred_check
      _
    $region51: #{tpu_custom_call.1} parent=1 // pred_check_branch
      %55 = sbr.rel (0) target = $region53
    $region52: #{tpu_custom_call.1} parent=1 // pred_region
      _
    $region53: #{tpu_custom_call.1} parent=1 // pred_fallthru
      _
    // Predicated region
    $region54: #{tpu_custom_call.1} parent=1 // pred_check
      _
    $region55: #{tpu_custom_call.1} parent=1 // pred_check_branch
      %57 = sbr.rel (0) target = $region57
    $region56: #{tpu_custom_call.1} parent=1 // pred_region
      _
    $region57: #{tpu_custom_call.1} parent=1 // pred_fallthru
      _
    // Predicated region
    $region58: #{tpu_custom_call.1} parent=1 // pred_check
      _
    $region59: #{tpu_custom_call.1} parent=1 // pred_check_branch
      %59 = sbr.rel (0) target = $region61
    $region60: #{tpu_custom_call.1} parent=1 // pred_region
      _
    $region61: #{tpu_custom_call.1} parent=1 // pred_fallthru
      _
    %s60 = sld [smem:[#allocation4]]
    %s61 = scalar_lea.vmem %s3, %s60
    %v62 = vld [vmem:[%s61] sm:$0x1]
    %v63 = vld [vmem:[%s2] sm:$0x1]
    %v64 = vadd.f32 %v62, %v63
    %vm65 = vcmask 253952
    %66 = vst.msk [vmem:[#allocation2] sm:$0x1] %vm65, %v64
    %s67 = sld [smem:[#allocation4 + $0x1]]
    %s68 = scalar_lea.vmem %s3, %s67
    %v69 = vld [vmem:[%s68] sm:$0x1]
    %v70 = vld [vmem:[%s2] sm:$0x1]
    %v71 = vadd.f32 %v69, %v70
    %72 = vst.msk [vmem:[#allocation2 + $0x1] sm:$0x1] %vm65, %v71
    %s73 = sld [smem:[#allocation4 + $0x2]]
    %s74 = scalar_lea.vmem %s3, %s73
    %v75 = vld [vmem:[%s74] sm:$0x1]
    %v76 = vld [vmem:[%s2] sm:$0x1]
    %v77 = vadd.f32 %v75, %v76
    %78 = vst.msk [vmem:[#allocation2 + $0x2] sm:$0x1] %vm65, %v77
    %s79 = sld [smem:[#allocation4 + $0x3]]
    %s80 = scalar_lea.vmem %s3, %s79
    %v81 = vld [vmem:[%s80] sm:$0x1]
    %v82 = vld [vmem:[%s2] sm:$0x1]
    %v83 = vadd.f32 %v81, %v82
    %84 = vst.msk [vmem:[#allocation2 + $0x3] sm:$0x1] %vm65, %v83
    %s85 = sld [smem:[#allocation4 + $0x4]]
    %s86 = scalar_lea.vmem %s3, %s85
    %v87 = vld [vmem:[%s86] sm:$0x1]
    %v88 = vld [vmem:[%s2] sm:$0x1]
    %v89 = vadd.f32 %v87, %v88
    %90 = vst.msk [vmem:[#allocation2 + $0x4] sm:$0x1] %vm65, %v89
    %s91 = sld [smem:[#allocation4 + $0x5]]
    %s92 = scalar_lea.vmem %s3, %s91
    %v93 = vld [vmem:[%s92] sm:$0x1]
    %v94 = vld [vmem:[%s2] sm:$0x1]
    %v95 = vadd.f32 %v93, %v94
    %96 = vst.msk [vmem:[#allocation2 + $0x5] sm:$0x1] %vm65, %v95
    %s97 = sld [smem:[#allocation4 + $0x6]]
    %s98 = scalar_lea.vmem %s3, %s97
    %v99 = vld [vmem:[%s98] sm:$0x1]
    %v100 = vld [vmem:[%s2] sm:$0x1]
    %v101 = vadd.f32 %v99, %v100
    %102 = vst.msk [vmem:[#allocation2 + $0x6] sm:$0x1] %vm65, %v101
    %s103 = sld [smem:[#allocation4 + $0x7]]
    %s104 = scalar_lea.vmem %s3, %s103
    %v105 = vld [vmem:[%s104] sm:$0x1]
    %v106 = vld [vmem:[%s2] sm:$0x1]
    %v107 = vadd.f32 %v105, %v106
    %108 = vst.msk [vmem:[#allocation2 + $0x7] sm:$0x1] %vm65, %v107
    %s109 = sld [smem:[#allocation4 + $0x8]]
    %s110 = scalar_lea.vmem %s3, %s109
    %v111 = vld [vmem:[%s110] sm:$0x1]
    %s112 = scalar_lea.vmem %s2, 1
    %v113 = vld [vmem:[%s112] sm:$0x1]
    %v114 = vadd.f32 %v111, %v113
    %115 = vst.msk [vmem:[#allocation2 + $0x8] sm:$0x1] %vm65, %v114
    %s116 = sld [smem:[#allocation4 + $0x9]]
    %s117 = scalar_lea.vmem %s3, %s116
    %v118 = vld [vmem:[%s117] sm:$0x1]
    %v119 = vld [vmem:[%s112] sm:$0x1]
    %v120 = vadd.f32 %v118, %v119
    %121 = vst.msk [vmem:[#allocation2 + $0x9] sm:$0x1] %vm65, %v120
    %s122 = sld [smem:[#allocation4 + $0xa]]
    %s123 = scalar_lea.vmem %s3, %s122
    %v124 = vld [vmem:[%s123] sm:$0x1]
    %v125 = vld [vmem:[%s112] sm:$0x1]
    %v126 = vadd.f32 %v124, %v125
    %127 = vst.msk [vmem:[#allocation2 + $0xa] sm:$0x1] %vm65, %v126
    %s128 = sld [smem:[#allocation4 + $0xb]]
    %s129 = scalar_lea.vmem %s3, %s128
    %v130 = vld [vmem:[%s129] sm:$0x1]
    %v131 = vld [vmem:[%s112] sm:$0x1]
    %v132 = vadd.f32 %v130, %v131
    %133 = vst.msk [vmem:[#allocation2 + $0xb] sm:$0x1] %vm65, %v132
    %s134 = sld [smem:[#allocation4 + $0xc]]
    %s135 = scalar_lea.vmem %s3, %s134
    %v136 = vld [vmem:[%s135] sm:$0x1]
    %v137 = vld [vmem:[%s112] sm:$0x1]
    %v138 = vadd.f32 %v136, %v137
    %139 = vst.msk [vmem:[#allocation2 + $0xc] sm:$0x1] %vm65, %v138
    %s140 = sld [smem:[#allocation4 + $0xd]]
    %s141 = scalar_lea.vmem %s3, %s140
    %v142 = vld [vmem:[%s141] sm:$0x1]
    %v143 = vld [vmem:[%s112] sm:$0x1]
    %v144 = vadd.f32 %v142, %v143
    %145 = vst.msk [vmem:[#allocation2 + $0xd] sm:$0x1] %vm65, %v144
    %s146 = sld [smem:[#allocation4 + $0xe]]
    %s147 = scalar_lea.vmem %s3, %s146
    %v148 = vld [vmem:[%s147] sm:$0x1]
    %v149 = vld [vmem:[%s112] sm:$0x1]
    %v150 = vadd.f32 %v148, %v149
    %151 = vst.msk [vmem:[#allocation2 + $0xe] sm:$0x1] %vm65, %v150
    %s152 = sld [smem:[#allocation4 + $0xf]]
    %s153 = scalar_lea.vmem %s3, %s152
    %v154 = vld [vmem:[%s153] sm:$0x1]
    %v155 = vld [vmem:[%s112] sm:$0x1]
    %v156 = vadd.f32 %v154, %v155
    %157 = vst.msk [vmem:[#allocation2 + $0xf] sm:$0x1] %vm65, %v156
    %v158 = vld [vmem:[#allocation2] sm:$0xff]
    %v159 = vld [vmem:[#allocation2 + $0x8] sm:$0xff]
    %v160 = vld [vmem:[%s1] sm:$0xff]
    %v161 = vld [vmem:[%s1 + $0x8] sm:$0xff]
    %vm162 = vcmp.eq.f32.partialorder %v160, 0.0
    %vm163 = vcmp.eq.f32.partialorder %v161, 0.0
    %v164 = vld [vmem:[%s4] sm:$0x1]
    %v165 = vld [vmem:[%s5] sm:$0x1]
    %vm166 = vcmask 261120
    %v167 = vsel %vm166, %v158, 0.0
    %168 = vadd.xlane.f32.xlu0 %v167
    %v169 = vpop.xlane.xlu0 %168
    %v170 = vsel %vm166, %v159, 0.0
    %171 = vadd.xlane.f32.xlu0 %v170
    %v172 = vpop.xlane.xlu0 %171
    %v173 = vrcp.pop 32.0
    %v174 = vmul.f32 32.0, %v173
    %v175 = vsub.f32 1.0, %v174
    %v176 = vmul.f32 %v173, %v175
    %v177 = vadd.f32 %v173, %v176
    %vm178 = vweird.f32 %v173
    %v179 = vsel %vm178, %v173, %v177
    %v180 = vmul.f32 %v169, %v179
    %v181 = vmul.f32 %v172, %v179
    %v182 = vsub.f32 %v158, %v180
    %v183 = vsub.f32 %v159, %v181
    %v184 = vmul.f32 %v182, %v182
    %v185 = vmul.f32 %v183, %v183
    %v186 = vsel %vm166, %v184, 0.0
    %187 = vadd.xlane.f32.xlu0 %v186
    %v188 = vpop.xlane.xlu0 %187
    %v189 = vsel %vm166, %v185, 0.0
    %190 = vadd.xlane.f32.xlu0 %v189
    %v191 = vpop.xlane.xlu0 %190
    %v192 = vmul.f32 %v188, %v179
    %v193 = vmul.f32 %v191, %v179
    %v194 = vadd.f32 %v192, 1e-05
    %v195 = vadd.f32 %v193, 1e-05
    %v196 = vrsqrt.pop %v194
    %v197 = vmul.f32 %v196, %v194
    %v198 = vmul.f32 %v197, %v196
    %v199 = vmul.f32 0.5, %v198
    %v200 = vsub.f32 1.5, %v199
    %v201 = vmul.f32 %v196, %v200
    %vm202 = vweird.f32 %v194
    %vm203 = vweird.f32 %v196
    %vm204 = vmor %vm202, %vm203
    %v205 = vsel %vm204, %v196, %v201
    %v206 = vrsqrt.pop %v195
    %v207 = vmul.f32 %v206, %v195
    %v208 = vmul.f32 %v207, %v206
    %v209 = vmul.f32 0.5, %v208
    %v210 = vsub.f32 1.5, %v209
    %v211 = vmul.f32 %v206, %v210
    %vm212 = vweird.f32 %v195
    %vm213 = vweird.f32 %v206
    %vm214 = vmor %vm212, %vm213
    %v215 = vsel %vm214, %v206, %v211
    %v216 = vmul.f32 %v182, %v205
    %v217 = vmul.f32 %v183, %v215
    %v219 = vperm.slane %v164, 0
    %v221 = vmul.f32 %v216, %v219
    %v222 = vmul.f32 %v217, %v219
    %v224 = vperm.slane %v165, 0
    %v226 = vadd.f32 %v221, %v224
    %v227 = vadd.f32 %v222, %v224
    %v228 = vmul.f32 %v226, 0.17677669
    %v229 = vmul.f32 %v227, 0.17677669
    %vm230 = vcmask 64512
    %v232 = vsel %vm230, %v228, 0
    %v235 = vsel %vm230, %v229, 0
    %v238 = vsel %vm230, %v226, 0
    %v241 = vsel %vm230, %v227, 0
    %243 = vmatpush.xpose.msra.mxu0 0.0
    %244 = vmatpush.xpose.msra.mxu0 0.0
    %245 = vmatpush.xpose.msra.mxu0 0.0
    %246 = vmatpush.xpose.msra.mxu0 0.0
    %247 = vmatpush.xpose.msra.mxu0 0.0
    %248 = vmatpush.xpose.msra.mxu0 0.0
    %249 = vmatpush.xpose.msra.mxu0 0.0
    %250 = vmatpush.xpose.msra.mxu0 0.0
    %251 = vmatpush.xpose.msra.mxu0 0.0
    %252 = vmatpush.xpose.msra.mxu0 0.0
    %253 = vmatpush.xpose.msra.mxu0 0.0
    %254 = vmatpush.xpose.msra.mxu0 0.0
    %255 = vmatpush.xpose.msra.mxu0 0.0
    %256 = vmatpush.xpose.msra.mxu0 0.0
    %257 = vmatpush.xpose.msra.mxu0 %v241
    %258 = vmatpush.xpose.msra.mxu0 %v238
    %259 = vmatmul.f32.gmra.mxu0 %v232
    %v260 = vpop.f32.mrf.mxu0
    %v261 = vadd.f32 0.0, %v260
    %262 = vmatmul.f32.gmra.mxu0 %v235
    %v263 = vpop.f32.mrf.mxu0
    %v264 = vadd.f32 0.0, %v263
    %265 = vdwg.mxu0
    %v266 = vsel %vm162, -1e+20, %v261
    %v267 = vsel %vm163, -1e+20, %v264
    %vm268 = vcmask 130048
    %v269 = vsel %vm268, %v266, -inf
    %270 = vmax.xlane.f32.xlu0 %v269
    %v271 = vpop.xlane.xlu0 %270
    %v272 = vsel %vm268, %v267, -inf
    %273 = vmax.xlane.f32.xlu0 %v272
    %v274 = vpop.xlane.xlu0 %273
    %v275 = vsub.f32 %v266, %v271
    %v276 = vsub.f32 %v267, %v274
    %v277 = vmul.f32 %v275, 1.442695
    %v278 = vpow.pop %v277
    %v279 = vmul.f32 %v276, 1.442695
    %v280 = vpow.pop %v279
    %v281 = vsel %vm268, %v278, 0.0
    %282 = vadd.xlane.f32.xlu0 %v281
    %v283 = vpop.xlane.xlu0 %282
    %v284 = vsel %vm268, %v280, 0.0
    %285 = vadd.xlane.f32.xlu0 %v284
    %v286 = vpop.xlane.xlu0 %285
    %v287 = vrcp.pop %v283
    %v288 = vrcp.pop %v286
    %v289 = vmul.f32 %v278, %v287
    %v290 = vmul.f32 %v280, %v288
    %v292 = vsel %vm268, %v289, 0
    %v295 = vsel %vm268, %v290, 0
    %297 = vmatpush.msra.mxu0 0.0
    %298 = vmatpush.msra.mxu0 0.0
    %299 = vmatpush.msra.mxu0 0.0
    %300 = vmatpush.msra.mxu0 0.0
    %301 = vmatpush.msra.mxu0 0.0
    %302 = vmatpush.msra.mxu0 0.0
    %303 = vmatpush.msra.mxu0 0.0
    %304 = vmatpush.msra.mxu0 0.0
    %305 = vmatpush.msra.mxu0 0.0
    %306 = vmatpush.msra.mxu0 0.0
    %307 = vmatpush.msra.mxu0 0.0
    %308 = vmatpush.msra.mxu0 0.0
    %309 = vmatpush.msra.mxu0 0.0
    %310 = vmatpush.msra.mxu0 0.0
    %311 = vmatpush.msra.mxu0 %v227
    %312 = vmatpush.msra.mxu0 %v226
    %313 = vmatmul.f32.gmra.mxu0 %v292
    %v314 = vpop.f32.mrf.mxu0
    %v315 = vadd.f32 0.0, %v314
    %316 = vmatmul.f32.gmra.mxu0 %v295
    %v317 = vpop.f32.mrf.mxu0
    %v318 = vadd.f32 0.0, %v317
    %319 = vdwg.mxu0
    %320 = vst.msk [vmem:[#allocation2] sm:$0xff] %vm230, %v315
    %321 = vst.msk [vmem:[#allocation2 + $0x8] sm:$0xff] %vm230, %v318
    %322 = vrot.lane.b32.xlu0 %v228, 120
    %v323 = vpop.permute.xlu0 %322
    %324 = vrot.lane.b32.xlu0 %v229, 120
    %v325 = vpop.permute.xlu0 %324
    %326 = vrot.lane.b32.xlu0 %v226, 120
    %v327 = vpop.permute.xlu0 %326
    %328 = vrot.lane.b32.xlu0 %v227, 120
    %v329 = vpop.permute.xlu0 %328
    %v330 = vsel %vm230, %v323, 0
    %v332 = vsel %vm230, %v325, 0
    %v334 = vsel %vm230, %v327, 0
    %v336 = vsel %vm230, %v329, 0
    %338 = vmatpush.xpose.msra.mxu0 0.0
    %339 = vmatpush.xpose.msra.mxu0 0.0
    %340 = vmatpush.xpose.msra.mxu0 0.0
    %341 = vmatpush.xpose.msra.mxu0 0.0
    %342 = vmatpush.xpose.msra.mxu0 0.0
    %343 = vmatpush.xpose.msra.mxu0 0.0
    %344 = vmatpush.xpose.msra.mxu0 0.0
    %345 = vmatpush.xpose.msra.mxu0 0.0
    %346 = vmatpush.xpose.msra.mxu0 0.0
    %347 = vmatpush.xpose.msra.mxu0 0.0
    %348 = vmatpush.xpose.msra.mxu0 0.0
    %349 = vmatpush.xpose.msra.mxu0 0.0
    %350 = vmatpush.xpose.msra.mxu0 0.0
    %351 = vmatpush.xpose.msra.mxu0 0.0
    %352 = vmatpush.xpose.msra.mxu0 %v336
    %353 = vmatpush.xpose.msra.mxu0 %v334
    %354 = vmatmul.f32.gmra.mxu0 %v330
    %v355 = vpop.f32.mrf.mxu0
    %v356 = vadd.f32 0.0, %v355
    %357 = vmatmul.f32.gmra.mxu0 %v332
    %v358 = vpop.f32.mrf.mxu0
    %v359 = vadd.f32 0.0, %v358
    %360 = vdwg.mxu0
    %v361 = vsel %vm162, -1e+20, %v356
    %v362 = vsel %vm163, -1e+20, %v359
    %v363 = vsel %vm268, %v361, -inf
    %364 = vmax.xlane.f32.xlu0 %v363
    %v365 = vpop.xlane.xlu0 %364
    %v366 = vsel %vm268, %v362, -inf
    %367 = vmax.xlane.f32.xlu0 %v366
    %v368 = vpop.xlane.xlu0 %367
    %v369 = vsub.f32 %v361, %v365
    %v370 = vsub.f32 %v362, %v368
    %v371 = vmul.f32 %v369, 1.442695
    %v372 = vpow.pop %v371
    %v373 = vmul.f32 %v370, 1.442695
    %v374 = vpow.pop %v373
    %v375 = vsel %vm268, %v372, 0.0
    %376 = vadd.xlane.f32.xlu0 %v375
    %v377 = vpop.xlane.xlu0 %376
    %v378 = vsel %vm268, %v374, 0.0
    %379 = vadd.xlane.f32.xlu0 %v378
    %v380 = vpop.xlane.xlu0 %379
    %v381 = vrcp.pop %v377
    %v382 = vrcp.pop %v380
    %v383 = vmul.f32 %v372, %v381
    %v384 = vmul.f32 %v374, %v382
    %v388 = vsel %vm268, %v383, 0
    %v391 = vsel %vm268, %v384, 0
    %393 = vmatpush.msra.mxu0 0.0
    %394 = vmatpush.msra.mxu0 0.0
    %395 = vmatpush.msra.mxu0 0.0
    %396 = vmatpush.msra.mxu0 0.0
    %397 = vmatpush.msra.mxu0 0.0
    %398 = vmatpush.msra.mxu0 0.0
    %399 = vmatpush.msra.mxu0 0.0
    %400 = vmatpush.msra.mxu0 0.0
    %401 = vmatpush.msra.mxu0 0.0
    %402 = vmatpush.msra.mxu0 0.0
    %403 = vmatpush.msra.mxu0 0.0
    %404 = vmatpush.msra.mxu0 0.0
    %405 = vmatpush.msra.mxu0 0.0
    %406 = vmatpush.msra.mxu0 0.0
    %407 = vmatpush.msra.mxu0 %v329
    %408 = vmatpush.msra.mxu0 %v327
    %409 = vmatmul.f32.gmra.mxu0 %v388
    %v410 = vpop.f32.mrf.mxu0
    %v411 = vadd.f32 0.0, %v410
    %412 = vmatmul.f32.gmra.mxu0 %v391
    %v413 = vpop.f32.mrf.mxu0
    %v414 = vadd.f32 0.0, %v413
    %415 = vdwg.mxu0
    %418 = vrot.lane.b32.xlu0 %v411, 8
    %v419 = vpop.permute.xlu0 %418
    %420 = vrot.lane.b32.xlu0 %v414, 8
    %v421 = vpop.permute.xlu0 %420
    %vm424 = vcmask 130112
    %425 = vst.msk [vmem:[#allocation2] sm:$0xff] %vm424, %v419
    %426 = vst.msk [vmem:[#allocation2 + $0x8] sm:$0xff] %vm424, %v421
    %427 = vrot.lane.b32.xlu0 %v228, 112
    %v428 = vpop.permute.xlu0 %427
    %429 = vrot.lane.b32.xlu0 %v229, 112
    %v430 = vpop.permute.xlu0 %429
    %431 = vrot.lane.b32.xlu0 %v226, 112
    %v432 = vpop.permute.xlu0 %431
    %433 = vrot.lane.b32.xlu0 %v227, 112
    %v434 = vpop.permute.xlu0 %433
    %v435 = vsel %vm230, %v428, 0
    %v437 = vsel %vm230, %v430, 0
    %v439 = vsel %vm230, %v432, 0
    %v441 = vsel %vm230, %v434, 0
    %443 = vmatpush.xpose.msra.mxu0 0.0
    %444 = vmatpush.xpose.msra.mxu0 0.0
    %445 = vmatpush.xpose.msra.mxu0 0.0
    %446 = vmatpush.xpose.msra.mxu0 0.0
    %447 = vmatpush.xpose.msra.mxu0 0.0
    %448 = vmatpush.xpose.msra.mxu0 0.0
    %449 = vmatpush.xpose.msra.mxu0 0.0
    %450 = vmatpush.xpose.msra.mxu0 0.0
    %451 = vmatpush.xpose.msra.mxu0 0.0
    %452 = vmatpush.xpose.msra.mxu0 0.0
    %453 = vmatpush.xpose.msra.mxu0 0.0
    %454 = vmatpush.xpose.msra.mxu0 0.0
    %455 = vmatpush.xpose.msra.mxu0 0.0
    %456 = vmatpush.xpose.msra.mxu0 0.0
    %457 = vmatpush.xpose.msra.mxu0 %v441
    %458 = vmatpush.xpose.msra.mxu0 %v439
    %459 = vmatmul.f32.gmra.mxu0 %v435
    %v460 = vpop.f32.mrf.mxu0
    %v461 = vadd.f32 0.0, %v460
    %462 = vmatmul.f32.gmra.mxu0 %v437
    %v463 = vpop.f32.mrf.mxu0
    %v464 = vadd.f32 0.0, %v463
    %465 = vdwg.mxu0
    %v466 = vsel %vm162, -1e+20, %v461
    %v467 = vsel %vm163, -1e+20, %v464
    %v468 = vsel %vm268, %v466, -inf
    %469 = vmax.xlane.f32.xlu0 %v468
    %v470 = vpop.xlane.xlu0 %469
    %v471 = vsel %vm268, %v467, -inf
    %472 = vmax.xlane.f32.xlu0 %v471
    %v473 = vpop.xlane.xlu0 %472
    %v474 = vsub.f32 %v466, %v470
    %v475 = vsub.f32 %v467, %v473
    %v476 = vmul.f32 %v474, 1.442695
    %v477 = vpow.pop %v476
    %v478 = vmul.f32 %v475, 1.442695
    %v479 = vpow.pop %v478
    %v480 = vsel %vm268, %v477, 0.0
    %481 = vadd.xlane.f32.xlu0 %v480
    %v482 = vpop.xlane.xlu0 %481
    %v483 = vsel %vm268, %v479, 0.0
    %484 = vadd.xlane.f32.xlu0 %v483
    %v485 = vpop.xlane.xlu0 %484
    %v486 = vrcp.pop %v482
    %v487 = vrcp.pop %v485
    %v488 = vmul.f32 %v477, %v486
    %v489 = vmul.f32 %v479, %v487
    %v493 = vsel %vm268, %v488, 0
    %v496 = vsel %vm268, %v489, 0
    %498 = vmatpush.msra.mxu0 0.0
    %499 = vmatpush.msra.mxu0 0.0
    %500 = vmatpush.msra.mxu0 0.0
    %501 = vmatpush.msra.mxu0 0.0
    %502 = vmatpush.msra.mxu0 0.0
    %503 = vmatpush.msra.mxu0 0.0
    %504 = vmatpush.msra.mxu0 0.0
    %505 = vmatpush.msra.mxu0 0.0
    %506 = vmatpush.msra.mxu0 0.0
    %507 = vmatpush.msra.mxu0 0.0
    %508 = vmatpush.msra.mxu0 0.0
    %509 = vmatpush.msra.mxu0 0.0
    %510 = vmatpush.msra.mxu0 0.0
    %511 = vmatpush.msra.mxu0 0.0
    %512 = vmatpush.msra.mxu0 %v434
    %513 = vmatpush.msra.mxu0 %v432
    %514 = vmatmul.f32.gmra.mxu0 %v493
    %v515 = vpop.f32.mrf.mxu0
    %v516 = vadd.f32 0.0, %v515
    %517 = vmatmul.f32.gmra.mxu0 %v496
    %v518 = vpop.f32.mrf.mxu0
    %v519 = vadd.f32 0.0, %v518
    %520 = vdwg.mxu0
    %523 = vrot.lane.b32.xlu0 %v516, 16
    %v524 = vpop.permute.xlu0 %523
    %525 = vrot.lane.b32.xlu0 %v519, 16
    %v526 = vpop.permute.xlu0 %525
    %vm529 = vcmask 195712
    %530 = vst.msk [vmem:[#allocation2] sm:$0xff] %vm529, %v524
    %531 = vst.msk [vmem:[#allocation2 + $0x8] sm:$0xff] %vm529, %v526
    %532 = vrot.lane.b32.xlu0 %v228, 104
    %v533 = vpop.permute.xlu0 %532
    %534 = vrot.lane.b32.xlu0 %v229, 104
    %v535 = vpop.permute.xlu0 %534
    %536 = vrot.lane.b32.xlu0 %v226, 104
    %v537 = vpop.permute.xlu0 %536
    %538 = vrot.lane.b32.xlu0 %v227, 104
    %v539 = vpop.permute.xlu0 %538
    %v540 = vsel %vm230, %v533, 0
    %v542 = vsel %vm230, %v535, 0
    %v544 = vsel %vm230, %v537, 0
    %v546 = vsel %vm230, %v539, 0
    %548 = vmatpush.xpose.msra.mxu0 0.0
    %549 = vmatpush.xpose.msra.mxu0 0.0
    %550 = vmatpush.xpose.msra.mxu0 0.0
    %551 = vmatpush.xpose.msra.mxu0 0.0
    %552 = vmatpush.xpose.msra.mxu0 0.0
    %553 = vmatpush.xpose.msra.mxu0 0.0
    %554 = vmatpush.xpose.msra.mxu0 0.0
    %555 = vmatpush.xpose.msra.mxu0 0.0
    %556 = vmatpush.xpose.msra.mxu0 0.0
    %557 = vmatpush.xpose.msra.mxu0 0.0
    %558 = vmatpush.xpose.msra.mxu0 0.0
    %559 = vmatpush.xpose.msra.mxu0 0.0
    %560 = vmatpush.xpose.msra.mxu0 0.0
    %561 = vmatpush.xpose.msra.mxu0 0.0
    %562 = vmatpush.xpose.msra.mxu0 %v546
    %563 = vmatpush.xpose.msra.mxu0 %v544
    %564 = vmatmul.f32.gmra.mxu0 %v540
    %v565 = vpop.f32.mrf.mxu0
    %v566 = vadd.f32 0.0, %v565
    %567 = vmatmul.f32.gmra.mxu0 %v542
    %v568 = vpop.f32.mrf.mxu0
    %v569 = vadd.f32 0.0, %v568
    %570 = vdwg.mxu0
    %v571 = vsel %vm162, -1e+20, %v566
    %v572 = vsel %vm163, -1e+20, %v569
    %v573 = vsel %vm268, %v571, -inf
    %574 = vmax.xlane.f32.xlu0 %v573
    %v575 = vpop.xlane.xlu0 %574
    %v576 = vsel %vm268, %v572, -inf
    %577 = vmax.xlane.f32.xlu0 %v576
    %v578 = vpop.xlane.xlu0 %577
    %v579 = vsub.f32 %v571, %v575
    %v580 = vsub.f32 %v572, %v578
    %v581 = vmul.f32 %v579, 1.442695
    %v582 = vpow.pop %v581
    %v583 = vmul.f32 %v580, 1.442695
    %v584 = vpow.pop %v583
    %v585 = vsel %vm268, %v582, 0.0
    %586 = vadd.xlane.f32.xlu0 %v585
    %v587 = vpop.xlane.xlu0 %586
    %v588 = vsel %vm268, %v584, 0.0
    %589 = vadd.xlane.f32.xlu0 %v588
    %v590 = vpop.xlane.xlu0 %589
    %v591 = vrcp.pop %v587
    %v592 = vrcp.pop %v590
    %v593 = vmul.f32 %v582, %v591
    %v594 = vmul.f32 %v584, %v592
    %v598 = vsel %vm268, %v593, 0
    %v601 = vsel %vm268, %v594, 0
    %603 = vmatpush.msra.mxu0 0.0
    %604 = vmatpush.msra.mxu0 0.0
    %605 = vmatpush.msra.mxu0 0.0
    %606 = vmatpush.msra.mxu0 0.0
    %607 = vmatpush.msra.mxu0 0.0
    %608 = vmatpush.msra.mxu0 0.0
    %609 = vmatpush.msra.mxu0 0.0
    %610 = vmatpush.msra.mxu0 0.0
    %611 = vmatpush.msra.mxu0 0.0
    %612 = vmatpush.msra.mxu0 0.0
    %613 = vmatpush.msra.mxu0 0.0
    %614 = vmatpush.msra.mxu0 0.0
    %615 = vmatpush.msra.mxu0 0.0
    %616 = vmatpush.msra.mxu0 0.0
    %617 = vmatpush.msra.mxu0 %v539
    %618 = vmatpush.msra.mxu0 %v537
    %619 = vmatmul.f32.gmra.mxu0 %v598
    %v620 = vpop.f32.mrf.mxu0
    %v621 = vadd.f32 0.0, %v620
    %622 = vmatmul.f32.gmra.mxu0 %v601
    %v623 = vpop.f32.mrf.mxu0
    %v624 = vadd.f32 0.0, %v623
    %625 = vdwg.mxu0
    %628 = vrot.lane.b32.xlu0 %v621, 24
    %v629 = vpop.permute.xlu0 %628
    %630 = vrot.lane.b32.xlu0 %v624, 24
    %v631 = vpop.permute.xlu0 %630
    %vm634 = vcmask 261312
    %635 = vst.msk [vmem:[#allocation2] sm:$0xff] %vm634, %v629
    %636 = vst.msk [vmem:[#allocation2 + $0x8] sm:$0xff] %vm634, %v631
    %v637 = vld [vmem:[#allocation2] sm:$0xff]
    %v638 = vld [vmem:[#allocation2 + $0x8] sm:$0xff]
    %v639 = vld [vmem:[%s8] sm:$0xff]
    %v640 = vld [vmem:[%s8 + $0x8] sm:$0xff]
    %v641 = vld [vmem:[%s8 + $0x10] sm:$0xff]
    %v642 = vld [vmem:[%s8 + $0x18] sm:$0xff]
    %v643 = vld [vmem:[%s9] sm:$0x1]
    %v645 = vperm.slane %v643, 0
    %v648 = vsel %vm166, %v637, 0
    %v651 = vsel %vm166, %v638, 0
    %653 = vmatpush.msra.mxu0 0.0
    %654 = vmatpush.msra.mxu0 0.0
    %655 = vmatpush.msra.mxu0 0.0
    %656 = vmatpush.msra.mxu0 0.0
    %657 = vmatpush.msra.mxu0 0.0
    %658 = vmatpush.msra.mxu0 0.0
    %659 = vmatpush.msra.mxu0 0.0
    %660 = vmatpush.msra.mxu0 0.0
    %661 = vmatpush.msra.mxu0 0.0
    %662 = vmatpush.msra.mxu0 0.0
    %663 = vmatpush.msra.mxu0 0.0
    %664 = vmatpush.msra.mxu0 0.0
    %665 = vmatpush.msra.mxu0 %v642
    %666 = vmatpush.msra.mxu0 %v641
    %667 = vmatpush.msra.mxu0 %v640
    %668 = vmatpush.msra.mxu0 %v639
    %669 = vmatmul.f32.gmra.mxu0 %v648
    %v670 = vpop.f32.mrf.mxu0
    %v671 = vadd.f32 %v645, %v670
    %672 = vmatmul.f32.gmra.mxu0 %v651
    %v673 = vpop.f32.mrf.mxu0
    %v674 = vadd.f32 %v645, %v673
    %675 = vdwg.mxu0
    %v676 = vadd.f32 %v671, %v158
    %v677 = vadd.f32 %v674, %v159
    %v678 = vld [vmem:[%s6] sm:$0x1]
    %v679 = vld [vmem:[%s7] sm:$0x1]
    %v680 = vsel %vm166, %v676, 0.0
    %681 = vadd.xlane.f32.xlu0 %v680
    %v682 = vpop.xlane.xlu0 %681
    %v683 = vsel %vm166, %v677, 0.0
    %684 = vadd.xlane.f32.xlu0 %v683
    %v685 = vpop.xlane.xlu0 %684
    %v686 = vmul.f32 %v682, %v179
    %v687 = vmul.f32 %v685, %v179
    %v688 = vsub.f32 %v676, %v686
    %v689 = vsub.f32 %v677, %v687
    %v690 = vmul.f32 %v688, %v688
    %v691 = vmul.f32 %v689, %v689
    %v692 = vsel %vm166, %v690, 0.0
    %693 = vadd.xlane.f32.xlu0 %v692
    %v694 = vpop.xlane.xlu0 %693
    %v695 = vsel %vm166, %v691, 0.0
    %696 = vadd.xlane.f32.xlu0 %v695
    %v697 = vpop.xlane.xlu0 %696
    %v698 = vmul.f32 %v694, %v179
    %v699 = vmul.f32 %v697, %v179
    %v700 = vadd.f32 %v698, 1e-05
    %v701 = vadd.f32 %v699, 1e-05
    %v702 = vrsqrt.pop %v700
    %v703 = vmul.f32 %v702, %v700
    %v704 = vmul.f32 %v703, %v702
    %v705 = vmul.f32 0.5, %v704
    %v706 = vsub.f32 1.5, %v705
    %v707 = vmul.f32 %v702, %v706
    %vm708 = vweird.f32 %v700
    %vm709 = vweird.f32 %v702
    %vm710 = vmor %vm708, %vm709
    %v711 = vsel %vm710, %v702, %v707
    %v712 = vrsqrt.pop %v701
    %v713 = vmul.f32 %v712, %v701
    %v714 = vmul.f32 %v713, %v712
    %v715 = vmul.f32 0.5, %v714
    %v716 = vsub.f32 1.5, %v715
    %v717 = vmul.f32 %v712, %v716
    %vm718 = vweird.f32 %v701
    %vm719 = vweird.f32 %v712
    %vm720 = vmor %vm718, %vm719
    %v721 = vsel %vm720, %v712, %v717
    %v722 = vmul.f32 %v688, %v711
    %v723 = vmul.f32 %v689, %v721
    %v725 = vperm.slane %v678, 0
    %v727 = vmul.f32 %v722, %v725
    %v728 = vmul.f32 %v723, %v725
    %v730 = vperm.slane %v679, 0
    %v732 = vadd.f32 %v727, %v730
    %v733 = vadd.f32 %v728, %v730
    %v734 = vld [vmem:[%s10] sm:$0xff]
    %v735 = vld [vmem:[%s10 + $0x8] sm:$0xff]
    %v736 = vld [vmem:[%s10 + $0x10] sm:$0xff]
    %v737 = vld [vmem:[%s10 + $0x18] sm:$0xff]
    %v738 = vld [vmem:[%s11] sm:$0x1]
    %v740 = vperm.slane %v738, 0
    %v743 = vsel %vm166, %v732, 0
    %v746 = vsel %vm166, %v733, 0
    %748 = vmatpush.msra.mxu0 0.0
    %749 = vmatpush.msra.mxu0 0.0
    %750 = vmatpush.msra.mxu0 0.0
    %751 = vmatpush.msra.mxu0 0.0
    %752 = vmatpush.msra.mxu0 0.0
    %753 = vmatpush.msra.mxu0 0.0
    %754 = vmatpush.msra.mxu0 0.0
    %755 = vmatpush.msra.mxu0 0.0
    %756 = vmatpush.msra.mxu0 0.0
    %757 = vmatpush.msra.mxu0 0.0
    %758 = vmatpush.msra.mxu0 0.0
    %759 = vmatpush.msra.mxu0 0.0
    %760 = vmatpush.msra.mxu0 %v737
    %761 = vmatpush.msra.mxu0 %v736
    %762 = vmatpush.msra.mxu0 %v735
    %763 = vmatpush.msra.mxu0 %v734
    %764 = vmatmul.f32.gmra.mxu0 %v743
    %v765 = vpop.f32.mrf.mxu0
    %v766 = vadd.f32 %v740, %v765
    %767 = vmatmul.f32.gmra.mxu0 %v746
    %v768 = vpop.f32.mrf.mxu0
    %v769 = vadd.f32 %v740, %v768
    %770 = vdwg.mxu0
    %v771 = vmax.f32 %v766, 0.0
    %v772 = vmax.f32 %v769, 0.0
    %v773 = vld [vmem:[%s12] sm:$0xff]
    %v774 = vld [vmem:[%s12 + $0x8] sm:$0xff]
    %v775 = vld [vmem:[%s12 + $0x10] sm:$0xff]
    %v776 = vld [vmem:[%s12 + $0x18] sm:$0xff]
    %v777 = vld [vmem:[%s12 + $0x20] sm:$0xff]
    %v778 = vld [vmem:[%s12 + $0x28] sm:$0xff]
    %v779 = vld [vmem:[%s12 + $0x30] sm:$0xff]
    %v780 = vld [vmem:[%s12 + $0x38] sm:$0xff]
    %v781 = vld [vmem:[%s13] sm:$0x1]
    %v783 = vperm.slane %v781, 0
    %vm785 = vcmask 523264
    %v787 = vsel %vm785, %v771, 0
    %v790 = vsel %vm785, %v772, 0
    %792 = vmatpush.msra.mxu0 0.0
    %793 = vmatpush.msra.mxu0 0.0
    %794 = vmatpush.msra.mxu0 0.0
    %795 = vmatpush.msra.mxu0 0.0
    %796 = vmatpush.msra.mxu0 0.0
    %797 = vmatpush.msra.mxu0 0.0
    %798 = vmatpush.msra.mxu0 0.0
    %799 = vmatpush.msra.mxu0 0.0
    %800 = vmatpush.msra.mxu0 %v780
    %801 = vmatpush.msra.mxu0 %v779
    %802 = vmatpush.msra.mxu0 %v778
    %803 = vmatpush.msra.mxu0 %v777
    %804 = vmatpush.msra.mxu0 %v776
    %805 = vmatpush.msra.mxu0 %v775
    %806 = vmatpush.msra.mxu0 %v774
    %807 = vmatpush.msra.mxu0 %v773
    %808 = vmatmul.f32.gmra.mxu0 %v787
    %v809 = vpop.f32.mrf.mxu0
    %v810 = vadd.f32 %v783, %v809
    %811 = vmatmul.f32.gmra.mxu0 %v790
    %v812 = vpop.f32.mrf.mxu0
    %v813 = vadd.f32 %v783, %v812
    %814 = vdwg.mxu0
    %v815 = vadd.f32 %v810, %v732
    %v816 = vadd.f32 %v813, %v733
    %s817 = scalar_lea.vmem %s4, 1
    %v818 = vld [vmem:[%s817] sm:$0x1]
    %s819 = scalar_lea.vmem %s5, 1
    %v820 = vld [vmem:[%s819] sm:$0x1]
    %v821 = vsel %vm166, %v815, 0.0
    %822 = vadd.xlane.f32.xlu0 %v821
    %v823 = vpop.xlane.xlu0 %822
    %v824 = vsel %vm166, %v816, 0.0
    %825 = vadd.xlane.f32.xlu0 %v824
    %v826 = vpop.xlane.xlu0 %825
    %v827 = vmul.f32 %v823, %v179
    %v828 = vmul.f32 %v826, %v179
    %v829 = vsub.f32 %v815, %v827
    %v830 = vsub.f32 %v816, %v828
    %v831 = vmul.f32 %v829, %v829
    %v832 = vmul.f32 %v830, %v830
    %v833 = vsel %vm166, %v831, 0.0
    %834 = vadd.xlane.f32.xlu0 %v833
    %v835 = vpop.xlane.xlu0 %834
    %v836 = vsel %vm166, %v832, 0.0
    %837 = vadd.xlane.f32.xlu0 %v836
    %v838 = vpop.xlane.xlu0 %837
    %v839 = vmul.f32 %v835, %v179
    %v840 = vmul.f32 %v838, %v179
    %v841 = vadd.f32 %v839, 1e-05
    %v842 = vadd.f32 %v840, 1e-05
    %v843 = vrsqrt.pop %v841
    %v844 = vmul.f32 %v843, %v841
    %v845 = vmul.f32 %v844, %v843
    %v846 = vmul.f32 0.5, %v845
    %v847 = vsub.f32 1.5, %v846
    %v848 = vmul.f32 %v843, %v847
    %vm849 = vweird.f32 %v841
    %vm850 = vweird.f32 %v843
    %vm851 = vmor %vm849, %vm850
    %v852 = vsel %vm851, %v843, %v848
    %v853 = vrsqrt.pop %v842
    %v854 = vmul.f32 %v853, %v842
    %v855 = vmul.f32 %v854, %v853
    %v856 = vmul.f32 0.5, %v855
    %v857 = vsub.f32 1.5, %v856
    %v858 = vmul.f32 %v853, %v857
    %vm859 = vweird.f32 %v842
    %vm860 = vweird.f32 %v853
    %vm861 = vmor %vm859, %vm860
    %v862 = vsel %vm861, %v853, %v858
    %v863 = vmul.f32 %v829, %v852
    %v864 = vmul.f32 %v830, %v862
    %v866 = vperm.slane %v818, 0
    %v868 = vmul.f32 %v863, %v866
    %v869 = vmul.f32 %v864, %v866
    %v871 = vperm.slane %v820, 0
    %v873 = vadd.f32 %v868, %v871
    %v874 = vadd.f32 %v869, %v871
    %v875 = vmul.f32 %v873, 0.17677669
    %v876 = vmul.f32 %v874, 0.17677669
    %v878 = vsel %vm230, %v875, 0
    %v881 = vsel %vm230, %v876, 0
    %v884 = vsel %vm230, %v873, 0
    %v887 = vsel %vm230, %v874, 0
    %889 = vmatpush.xpose.msra.mxu0 0.0
    %890 = vmatpush.xpose.msra.mxu0 0.0
    %891 = vmatpush.xpose.msra.mxu0 0.0
    %892 = vmatpush.xpose.msra.mxu0 0.0
    %893 = vmatpush.xpose.msra.mxu0 0.0
    %894 = vmatpush.xpose.msra.mxu0 0.0
    %895 = vmatpush.xpose.msra.mxu0 0.0
    %896 = vmatpush.xpose.msra.mxu0 0.0
    %897 = vmatpush.xpose.msra.mxu0 0.0
    %898 = vmatpush.xpose.msra.mxu0 0.0
    %899 = vmatpush.xpose.msra.mxu0 0.0
    %900 = vmatpush.xpose.msra.mxu0 0.0
    %901 = vmatpush.xpose.msra.mxu0 0.0
    %902 = vmatpush.xpose.msra.mxu0 0.0
    %903 = vmatpush.xpose.msra.mxu0 %v887
    %904 = vmatpush.xpose.msra.mxu0 %v884
    %905 = vmatmul.f32.gmra.mxu0 %v878
    %v906 = vpop.f32.mrf.mxu0
    %v907 = vadd.f32 0.0, %v906
    %908 = vmatmul.f32.gmra.mxu0 %v881
    %v909 = vpop.f32.mrf.mxu0
    %v910 = vadd.f32 0.0, %v909
    %911 = vdwg.mxu0
    %v912 = vsel %vm162, -1e+20, %v907
    %v913 = vsel %vm163, -1e+20, %v910
    %v914 = vsel %vm268, %v912, -inf
    %915 = vmax.xlane.f32.xlu0 %v914
    %v916 = vpop.xlane.xlu0 %915
    %v917 = vsel %vm268, %v913, -inf
    %918 = vmax.xlane.f32.xlu0 %v917
    %v919 = vpop.xlane.xlu0 %918
    %v920 = vsub.f32 %v912, %v916
    %v921 = vsub.f32 %v913, %v919
    %v922 = vmul.f32 %v920, 1.442695
    %v923 = vpow.pop %v922
    %v924 = vmul.f32 %v921, 1.442695
    %v925 = vpow.pop %v924
    %v926 = vsel %vm268, %v923, 0.0
    %927 = vadd.xlane.f32.xlu0 %v926
    %v928 = vpop.xlane.xlu0 %927
    %v929 = vsel %vm268, %v925, 0.0
    %930 = vadd.xlane.f32.xlu0 %v929
    %v931 = vpop.xlane.xlu0 %930
    %v932 = vrcp.pop %v928
    %v933 = vrcp.pop %v931
    %v934 = vmul.f32 %v923, %v932
    %v935 = vmul.f32 %v925, %v933
    %v937 = vsel %vm268, %v934, 0
    %v940 = vsel %vm268, %v935, 0
    %942 = vmatpush.msra.mxu0 0.0
    %943 = vmatpush.msra.mxu0 0.0
    %944 = vmatpush.msra.mxu0 0.0
    %945 = vmatpush.msra.mxu0 0.0
    %946 = vmatpush.msra.mxu0 0.0
    %947 = vmatpush.msra.mxu0 0.0
    %948 = vmatpush.msra.mxu0 0.0
    %949 = vmatpush.msra.mxu0 0.0
    %950 = vmatpush.msra.mxu0 0.0
    %951 = vmatpush.msra.mxu0 0.0
    %952 = vmatpush.msra.mxu0 0.0
    %953 = vmatpush.msra.mxu0 0.0
    %954 = vmatpush.msra.mxu0 0.0
    %955 = vmatpush.msra.mxu0 0.0
    %956 = vmatpush.msra.mxu0 %v874
    %957 = vmatpush.msra.mxu0 %v873
    %958 = vmatmul.f32.gmra.mxu0 %v937
    %v959 = vpop.f32.mrf.mxu0
    %v960 = vadd.f32 0.0, %v959
    %961 = vmatmul.f32.gmra.mxu0 %v940
    %v962 = vpop.f32.mrf.mxu0
    %v963 = vadd.f32 0.0, %v962
    %964 = vdwg.mxu0
    %965 = vst.msk [vmem:[#allocation2] sm:$0xff] %vm230, %v960
    %966 = vst.msk [vmem:[#allocation2 + $0x8] sm:$0xff] %vm230, %v963
    %967 = vrot.lane.b32.xlu0 %v875, 120
    %v968 = vpop.permute.xlu0 %967
    %969 = vrot.lane.b32.xlu0 %v876, 120
    %v970 = vpop.permute.xlu0 %969
    %971 = vrot.lane.b32.xlu0 %v873, 120
    %v972 = vpop.permute.xlu0 %971
    %973 = vrot.lane.b32.xlu0 %v874, 120
    %v974 = vpop.permute.xlu0 %973
    %v975 = vsel %vm230, %v968, 0
    %v977 = vsel %vm230, %v970, 0
    %v979 = vsel %vm230, %v972, 0
    %v981 = vsel %vm230, %v974, 0
    %983 = vmatpush.xpose.msra.mxu0 0.0
    %984 = vmatpush.xpose.msra.mxu0 0.0
    %985 = vmatpush.xpose.msra.mxu0 0.0
    %986 = vmatpush.xpose.msra.mxu0 0.0
    %987 = vmatpush.xpose.msra.mxu0 0.0
    %988 = vmatpush.xpose.msra.mxu0 0.0
    %989 = vmatpush.xpose.msra.mxu0 0.0
    %990 = vmatpush.xpose.msra.mxu0 0.0
    %991 = vmatpush.xpose.msra.mxu0 0.0
    %992 = vmatpush.xpose.msra.mxu0 0.0
    %993 = vmatpush.xpose.msra.mxu0 0.0
    %994 = vmatpush.xpose.msra.mxu0 0.0
    %995 = vmatpush.xpose.msra.mxu0 0.0
    %996 = vmatpush.xpose.msra.mxu0 0.0
    %997 = vmatpush.xpose.msra.mxu0 %v981
    %998 = vmatpush.xpose.msra.mxu0 %v979
    %999 = vmatmul.f32.gmra.mxu0 %v975
    %v1000 = vpop.f32.mrf.mxu0
    %v1001 = vadd.f32 0.0, %v1000
    %1002 = vmatmul.f32.gmra.mxu0 %v977
    %v1003 = vpop.f32.mrf.mxu0
    %v1004 = vadd.f32 0.0, %v1003
    %1005 = vdwg.mxu0
    %v1006 = vsel %vm162, -1e+20, %v1001
    %v1007 = vsel %vm163, -1e+20, %v1004
    %v1008 = vsel %vm268, %v1006, -inf
    %1009 = vmax.xlane.f32.xlu0 %v1008
    %v1010 = vpop.xlane.xlu0 %1009
    %v1011 = vsel %vm268, %v1007, -inf
    %1012 = vmax.xlane.f32.xlu0 %v1011
    %v1013 = vpop.xlane.xlu0 %1012
    %v1014 = vsub.f32 %v1006, %v1010
    %v1015 = vsub.f32 %v1007, %v1013
    %v1016 = vmul.f32 %v1014, 1.442695
    %v1017 = vpow.pop %v1016
    %v1018 = vmul.f32 %v1015, 1.442695
    %v1019 = vpow.pop %v1018
    %v1020 = vsel %vm268, %v1017, 0.0
    %1021 = vadd.xlane.f32.xlu0 %v1020
    %v1022 = vpop.xlane.xlu0 %1021
    %v1023 = vsel %vm268, %v1019, 0.0
    %1024 = vadd.xlane.f32.xlu0 %v1023
    %v1025 = vpop.xlane.xlu0 %1024
    %v1026 = vrcp.pop %v1022
    %v1027 = vrcp.pop %v1025
    %v1028 = vmul.f32 %v1017, %v1026
    %v1029 = vmul.f32 %v1019, %v1027
    %v1033 = vsel %vm268, %v1028, 0
    %v1036 = vsel %vm268, %v1029, 0
    %1038 = vmatpush.msra.mxu0 0.0
    %1039 = vmatpush.msra.mxu0 0.0
    %1040 = vmatpush.msra.mxu0 0.0
    %1041 = vmatpush.msra.mxu0 0.0
    %1042 = vmatpush.msra.mxu0 0.0
    %1043 = vmatpush.msra.mxu0 0.0
    %1044 = vmatpush.msra.mxu0 0.0
    %1045 = vmatpush.msra.mxu0 0.0
    %1046 = vmatpush.msra.mxu0 0.0
    %1047 = vmatpush.msra.mxu0 0.0
    %1048 = vmatpush.msra.mxu0 0.0
    %1049 = vmatpush.msra.mxu0 0.0
    %1050 = vmatpush.msra.mxu0 0.0
    %1051 = vmatpush.msra.mxu0 0.0
    %1052 = vmatpush.msra.mxu0 %v974
    %1053 = vmatpush.msra.mxu0 %v972
    %1054 = vmatmul.f32.gmra.mxu0 %v1033
    %v1055 = vpop.f32.mrf.mxu0
    %v1056 = vadd.f32 0.0, %v1055
    %1057 = vmatmul.f32.gmra.mxu0 %v1036
    %v1058 = vpop.f32.mrf.mxu0
    %v1059 = vadd.f32 0.0, %v1058
    %1060 = vdwg.mxu0
    %1063 = vrot.lane.b32.xlu0 %v1056, 8
    %v1064 = vpop.permute.xlu0 %1063
    %1065 = vrot.lane.b32.xlu0 %v1059, 8
    %v1066 = vpop.permute.xlu0 %1065
    %1069 = vst.msk [vmem:[#allocation2] sm:$0xff] %vm424, %v1064
    %1070 = vst.msk [vmem:[#allocation2 + $0x8] sm:$0xff] %vm424, %v1066
    %1071 = vrot.lane.b32.xlu0 %v875, 112
    %v1072 = vpop.permute.xlu0 %1071
    %1073 = vrot.lane.b32.xlu0 %v876, 112
    %v1074 = vpop.permute.xlu0 %1073
    %1075 = vrot.lane.b32.xlu0 %v873, 112
    %v1076 = vpop.permute.xlu0 %1075
    %1077 = vrot.lane.b32.xlu0 %v874, 112
    %v1078 = vpop.permute.xlu0 %1077
    %v1079 = vsel %vm230, %v1072, 0
    %v1081 = vsel %vm230, %v1074, 0
    %v1083 = vsel %vm230, %v1076, 0
    %v1085 = vsel %vm230, %v1078, 0
    %1087 = vmatpush.xpose.msra.mxu0 0.0
    %1088 = vmatpush.xpose.msra.mxu0 0.0
    %1089 = vmatpush.xpose.msra.mxu0 0.0
    %1090 = vmatpush.xpose.msra.mxu0 0.0
    %1091 = vmatpush.xpose.msra.mxu0 0.0
    %1092 = vmatpush.xpose.msra.mxu0 0.0
    %1093 = vmatpush.xpose.msra.mxu0 0.0
    %1094 = vmatpush.xpose.msra.mxu0 0.0
    %1095 = vmatpush.xpose.msra.mxu0 0.0
    %1096 = vmatpush.xpose.msra.mxu0 0.0
    %1097 = vmatpush.xpose.msra.mxu0 0.0
    %1098 = vmatpush.xpose.msra.mxu0 0.0
    %1099 = vmatpush.xpose.msra.mxu0 0.0
    %1100 = vmatpush.xpose.msra.mxu0 0.0
    %1101 = vmatpush.xpose.msra.mxu0 %v1085
    %1102 = vmatpush.xpose.msra.mxu0 %v1083
    %1103 = vmatmul.f32.gmra.mxu0 %v1079
    %v1104 = vpop.f32.mrf.mxu0
    %v1105 = vadd.f32 0.0, %v1104
    %1106 = vmatmul.f32.gmra.mxu0 %v1081
    %v1107 = vpop.f32.mrf.mxu0
    %v1108 = vadd.f32 0.0, %v1107
    %1109 = vdwg.mxu0
    %v1110 = vsel %vm162, -1e+20, %v1105
    %v1111 = vsel %vm163, -1e+20, %v1108
    %v1112 = vsel %vm268, %v1110, -inf
    %1113 = vmax.xlane.f32.xlu0 %v1112
    %v1114 = vpop.xlane.xlu0 %1113
    %v1115 = vsel %vm268, %v1111, -inf
    %1116 = vmax.xlane.f32.xlu0 %v1115
    %v1117 = vpop.xlane.xlu0 %1116
    %v1118 = vsub.f32 %v1110, %v1114
    %v1119 = vsub.f32 %v1111, %v1117
    %v1120 = vmul.f32 %v1118, 1.442695
    %v1121 = vpow.pop %v1120
    %v1122 = vmul.f32 %v1119, 1.442695
    %v1123 = vpow.pop %v1122
    %v1124 = vsel %vm268, %v1121, 0.0
    %1125 = vadd.xlane.f32.xlu0 %v1124
    %v1126 = vpop.xlane.xlu0 %1125
    %v1127 = vsel %vm268, %v1123, 0.0
    %1128 = vadd.xlane.f32.xlu0 %v1127
    %v1129 = vpop.xlane.xlu0 %1128
    %v1130 = vrcp.pop %v1126
    %v1131 = vrcp.pop %v1129
    %v1132 = vmul.f32 %v1121, %v1130
    %v1133 = vmul.f32 %v1123, %v1131
    %v1137 = vsel %vm268, %v1132, 0
    %v1140 = vsel %vm268, %v1133, 0
    %1142 = vmatpush.msra.mxu0 0.0
    %1143 = vmatpush.msra.mxu0 0.0
    %1144 = vmatpush.msra.mxu0 0.0
    %1145 = vmatpush.msra.mxu0 0.0
    %1146 = vmatpush.msra.mxu0 0.0
    %1147 = vmatpush.msra.mxu0 0.0
    %1148 = vmatpush.msra.mxu0 0.0
    %1149 = vmatpush.msra.mxu0 0.0
    %1150 = vmatpush.msra.mxu0 0.0
    %1151 = vmatpush.msra.mxu0 0.0
    %1152 = vmatpush.msra.mxu0 0.0
    %1153 = vmatpush.msra.mxu0 0.0
    %1154 = vmatpush.msra.mxu0 0.0
    %1155 = vmatpush.msra.mxu0 0.0
    %1156 = vmatpush.msra.mxu0 %v1078
    %1157 = vmatpush.msra.mxu0 %v1076
    %1158 = vmatmul.f32.gmra.mxu0 %v1137
    %v1159 = vpop.f32.mrf.mxu0
    %v1160 = vadd.f32 0.0, %v1159
    %1161 = vmatmul.f32.gmra.mxu0 %v1140
    %v1162 = vpop.f32.mrf.mxu0
    %v1163 = vadd.f32 0.0, %v1162
    %1164 = vdwg.mxu0
    %1167 = vrot.lane.b32.xlu0 %v1160, 16
    %v1168 = vpop.permute.xlu0 %1167
    %1169 = vrot.lane.b32.xlu0 %v1163, 16
    %v1170 = vpop.permute.xlu0 %1169
    %1173 = vst.msk [vmem:[#allocation2] sm:$0xff] %vm529, %v1168
    %1174 = vst.msk [vmem:[#allocation2 + $0x8] sm:$0xff] %vm529, %v1170
    %1175 = vrot.lane.b32.xlu0 %v875, 104
    %v1176 = vpop.permute.xlu0 %1175
    %1177 = vrot.lane.b32.xlu0 %v876, 104
    %v1178 = vpop.permute.xlu0 %1177
    %1179 = vrot.lane.b32.xlu0 %v873, 104
    %v1180 = vpop.permute.xlu0 %1179
    %1181 = vrot.lane.b32.xlu0 %v874, 104
    %v1182 = vpop.permute.xlu0 %1181
    %v1183 = vsel %vm230, %v1176, 0
    %v1185 = vsel %vm230, %v1178, 0
    %v1187 = vsel %vm230, %v1180, 0
    %v1189 = vsel %vm230, %v1182, 0
    %1191 = vmatpush.xpose.msra.mxu0 0.0
    %1192 = vmatpush.xpose.msra.mxu0 0.0
    %1193 = vmatpush.xpose.msra.mxu0 0.0
    %1194 = vmatpush.xpose.msra.mxu0 0.0
    %1195 = vmatpush.xpose.msra.mxu0 0.0
    %1196 = vmatpush.xpose.msra.mxu0 0.0
    %1197 = vmatpush.xpose.msra.mxu0 0.0
    %1198 = vmatpush.xpose.msra.mxu0 0.0
    %1199 = vmatpush.xpose.msra.mxu0 0.0
    %1200 = vmatpush.xpose.msra.mxu0 0.0
    %1201 = vmatpush.xpose.msra.mxu0 0.0
    %1202 = vmatpush.xpose.msra.mxu0 0.0
    %1203 = vmatpush.xpose.msra.mxu0 0.0
    %1204 = vmatpush.xpose.msra.mxu0 0.0
    %1205 = vmatpush.xpose.msra.mxu0 %v1189
    %1206 = vmatpush.xpose.msra.mxu0 %v1187
    %1207 = vmatmul.f32.gmra.mxu0 %v1183
    %v1208 = vpop.f32.mrf.mxu0
    %v1209 = vadd.f32 0.0, %v1208
    %1210 = vmatmul.f32.gmra.mxu0 %v1185
    %v1211 = vpop.f32.mrf.mxu0
    %v1212 = vadd.f32 0.0, %v1211
    %1213 = vdwg.mxu0
    %v1214 = vsel %vm162, -1e+20, %v1209
    %v1215 = vsel %vm163, -1e+20, %v1212
    %v1216 = vsel %vm268, %v1214, -inf
    %1217 = vmax.xlane.f32.xlu0 %v1216
    %v1218 = vpop.xlane.xlu0 %1217
    %v1219 = vsel %vm268, %v1215, -inf
    %1220 = vmax.xlane.f32.xlu0 %v1219
    %v1221 = vpop.xlane.xlu0 %1220
    %v1222 = vsub.f32 %v1214, %v1218
    %v1223 = vsub.f32 %v1215, %v1221
    %v1224 = vmul.f32 %v1222, 1.442695
    %v1225 = vpow.pop %v1224
    %v1226 = vmul.f32 %v1223, 1.442695
    %v1227 = vpow.pop %v1226
    %v1228 = vsel %vm268, %v1225, 0.0
    %1229 = vadd.xlane.f32.xlu0 %v1228
    %v1230 = vpop.xlane.xlu0 %1229
    %v1231 = vsel %vm268, %v1227, 0.0
    %1232 = vadd.xlane.f32.xlu0 %v1231
    %v1233 = vpop.xlane.xlu0 %1232
    %v1234 = vrcp.pop %v1230
    %v1235 = vrcp.pop %v1233
    %v1236 = vmul.f32 %v1225, %v1234
    %v1237 = vmul.f32 %v1227, %v1235
    %v1241 = vsel %vm268, %v1236, 0
    %v1244 = vsel %vm268, %v1237, 0
    %1246 = vmatpush.msra.mxu0 0.0
    %1247 = vmatpush.msra.mxu0 0.0
    %1248 = vmatpush.msra.mxu0 0.0
    %1249 = vmatpush.msra.mxu0 0.0
    %1250 = vmatpush.msra.mxu0 0.0
    %1251 = vmatpush.msra.mxu0 0.0
    %1252 = vmatpush.msra.mxu0 0.0
    %1253 = vmatpush.msra.mxu0 0.0
    %1254 = vmatpush.msra.mxu0 0.0
    %1255 = vmatpush.msra.mxu0 0.0
    %1256 = vmatpush.msra.mxu0 0.0
    %1257 = vmatpush.msra.mxu0 0.0
    %1258 = vmatpush.msra.mxu0 0.0
    %1259 = vmatpush.msra.mxu0 0.0
    %1260 = vmatpush.msra.mxu0 %v1182
    %1261 = vmatpush.msra.mxu0 %v1180
    %1262 = vmatmul.f32.gmra.mxu0 %v1241
    %v1263 = vpop.f32.mrf.mxu0
    %v1264 = vadd.f32 0.0, %v1263
    %1265 = vmatmul.f32.gmra.mxu0 %v1244
    %v1266 = vpop.f32.mrf.mxu0
    %v1267 = vadd.f32 0.0, %v1266
    %1268 = vdwg.mxu0
    %1271 = vrot.lane.b32.xlu0 %v1264, 24
    %v1272 = vpop.permute.xlu0 %1271
    %1273 = vrot.lane.b32.xlu0 %v1267, 24
    %v1274 = vpop.permute.xlu0 %1273
    %1277 = vst.msk [vmem:[#allocation2] sm:$0xff] %vm634, %v1272
    %1278 = vst.msk [vmem:[#allocation2 + $0x8] sm:$0xff] %vm634, %v1274
    %v1279 = vld [vmem:[#allocation2] sm:$0xff]
    %v1280 = vld [vmem:[#allocation2 + $0x8] sm:$0xff]
    %s1281 = scalar_lea.vmem %s8, 32
    %v1282 = vld [vmem:[%s1281] sm:$0xff]
    %v1283 = vld [vmem:[%s1281 + $0x8] sm:$0xff]
    %v1284 = vld [vmem:[%s1281 + $0x10] sm:$0xff]
    %v1285 = vld [vmem:[%s1281 + $0x18] sm:$0xff]
    %s1286 = scalar_lea.vmem %s9, 1
    %v1287 = vld [vmem:[%s1286] sm:$0x1]
    %v1289 = vperm.slane %v1287, 0
    %v1292 = vsel %vm166, %v1279, 0
    %v1295 = vsel %vm166, %v1280, 0
    %1297 = vmatpush.msra.mxu0 0.0
    %1298 = vmatpush.msra.mxu0 0.0
    %1299 = vmatpush.msra.mxu0 0.0
    %1300 = vmatpush.msra.mxu0 0.0
    %1301 = vmatpush.msra.mxu0 0.0
    %1302 = vmatpush.msra.mxu0 0.0
    %1303 = vmatpush.msra.mxu0 0.0
    %1304 = vmatpush.msra.mxu0 0.0
    %1305 = vmatpush.msra.mxu0 0.0
    %1306 = vmatpush.msra.mxu0 0.0
    %1307 = vmatpush.msra.mxu0 0.0
    %1308 = vmatpush.msra.mxu0 0.0
    %1309 = vmatpush.msra.mxu0 %v1285
    %1310 = vmatpush.msra.mxu0 %v1284
    %1311 = vmatpush.msra.mxu0 %v1283
    %1312 = vmatpush.msra.mxu0 %v1282
    %1313 = vmatmul.f32.gmra.mxu0 %v1292
    %v1314 = vpop.f32.mrf.mxu0
    %v1315 = vadd.f32 %v1289, %v1314
    %1316 = vmatmul.f32.gmra.mxu0 %v1295
    %v1317 = vpop.f32.mrf.mxu0
    %v1318 = vadd.f32 %v1289, %v1317
    %1319 = vdwg.mxu0
    %v1320 = vadd.f32 %v1315, %v815
    %v1321 = vadd.f32 %v1318, %v816
    %s1322 = scalar_lea.vmem %s6, 1
    %v1323 = vld [vmem:[%s1322] sm:$0x1]
    %s1324 = scalar_lea.vmem %s7, 1
    %v1325 = vld [vmem:[%s1324] sm:$0x1]
    %v1326 = vsel %vm166, %v1320, 0.0
    %1327 = vadd.xlane.f32.xlu0 %v1326
    %v1328 = vpop.xlane.xlu0 %1327
    %v1329 = vsel %vm166, %v1321, 0.0
    %1330 = vadd.xlane.f32.xlu0 %v1329
    %v1331 = vpop.xlane.xlu0 %1330
    %v1332 = vmul.f32 %v1328, %v179
    %v1333 = vmul.f32 %v1331, %v179
    %v1334 = vsub.f32 %v1320, %v1332
    %v1335 = vsub.f32 %v1321, %v1333
    %v1336 = vmul.f32 %v1334, %v1334
    %v1337 = vmul.f32 %v1335, %v1335
    %v1338 = vsel %vm166, %v1336, 0.0
    %1339 = vadd.xlane.f32.xlu0 %v1338
    %v1340 = vpop.xlane.xlu0 %1339
    %v1341 = vsel %vm166, %v1337, 0.0
    %1342 = vadd.xlane.f32.xlu0 %v1341
    %v1343 = vpop.xlane.xlu0 %1342
    %v1344 = vmul.f32 %v1340, %v179
    %v1345 = vmul.f32 %v1343, %v179
    %v1346 = vadd.f32 %v1344, 1e-05
    %v1347 = vadd.f32 %v1345, 1e-05
    %v1348 = vrsqrt.pop %v1346
    %v1349 = vmul.f32 %v1348, %v1346
    %v1350 = vmul.f32 %v1349, %v1348
    %v1351 = vmul.f32 0.5, %v1350
    %v1352 = vsub.f32 1.5, %v1351
    %v1353 = vmul.f32 %v1348, %v1352
    %vm1354 = vweird.f32 %v1346
    %vm1355 = vweird.f32 %v1348
    %vm1356 = vmor %vm1354, %vm1355
    %v1357 = vsel %vm1356, %v1348, %v1353
    %v1358 = vrsqrt.pop %v1347
    %v1359 = vmul.f32 %v1358, %v1347
    %v1360 = vmul.f32 %v1359, %v1358
    %v1361 = vmul.f32 0.5, %v1360
    %v1362 = vsub.f32 1.5, %v1361
    %v1363 = vmul.f32 %v1358, %v1362
    %vm1364 = vweird.f32 %v1347
    %vm1365 = vweird.f32 %v1358
    %vm1366 = vmor %vm1364, %vm1365
    %v1367 = vsel %vm1366, %v1358, %v1363
    %v1368 = vmul.f32 %v1334, %v1357
    %v1369 = vmul.f32 %v1335, %v1367
    %v1371 = vperm.slane %v1323, 0
    %v1373 = vmul.f32 %v1368, %v1371
    %v1374 = vmul.f32 %v1369, %v1371
    %v1376 = vperm.slane %v1325, 0
    %v1378 = vadd.f32 %v1373, %v1376
    %v1379 = vadd.f32 %v1374, %v1376
    %s1380 = scalar_lea.vmem %s10, 32
    %v1381 = vld [vmem:[%s1380] sm:$0xff]
    %v1382 = vld [vmem:[%s1380 + $0x8] sm:$0xff]
    %v1383 = vld [vmem:[%s1380 + $0x10] sm:$0xff]
    %v1384 = vld [vmem:[%s1380 + $0x18] sm:$0xff]
    %s1385 = scalar_lea.vmem %s11, 1
    %v1386 = vld [vmem:[%s1385] sm:$0x1]
    %v1388 = vperm.slane %v1386, 0
    %v1391 = vsel %vm166, %v1378, 0
    %v1394 = vsel %vm166, %v1379, 0
    %1396 = vmatpush.msra.mxu0 0.0
    %1397 = vmatpush.msra.mxu0 0.0
    %1398 = vmatpush.msra.mxu0 0.0
    %1399 = vmatpush.msra.mxu0 0.0
    %1400 = vmatpush.msra.mxu0 0.0
    %1401 = vmatpush.msra.mxu0 0.0
    %1402 = vmatpush.msra.mxu0 0.0
    %1403 = vmatpush.msra.mxu0 0.0
    %1404 = vmatpush.msra.mxu0 0.0
    %1405 = vmatpush.msra.mxu0 0.0
    %1406 = vmatpush.msra.mxu0 0.0
    %1407 = vmatpush.msra.mxu0 0.0
    %1408 = vmatpush.msra.mxu0 %v1384
    %1409 = vmatpush.msra.mxu0 %v1383
    %1410 = vmatpush.msra.mxu0 %v1382
    %1411 = vmatpush.msra.mxu0 %v1381
    %1412 = vmatmul.f32.gmra.mxu0 %v1391
    %v1413 = vpop.f32.mrf.mxu0
    %v1414 = vadd.f32 %v1388, %v1413
    %1415 = vmatmul.f32.gmra.mxu0 %v1394
    %v1416 = vpop.f32.mrf.mxu0
    %v1417 = vadd.f32 %v1388, %v1416
    %1418 = vdwg.mxu0
    %v1419 = vmax.f32 %v1414, 0.0
    %v1420 = vmax.f32 %v1417, 0.0
    %s1421 = scalar_lea.vmem %s12, 64
    %v1422 = vld [vmem:[%s1421] sm:$0xff]
    %v1423 = vld [vmem:[%s1421 + $0x8] sm:$0xff]
    %v1424 = vld [vmem:[%s1421 + $0x10] sm:$0xff]
    %v1425 = vld [vmem:[%s1421 + $0x18] sm:$0xff]
    %v1426 = vld [vmem:[%s1421 + $0x20] sm:$0xff]
    %v1427 = vld [vmem:[%s1421 + $0x28] sm:$0xff]
    %v1428 = vld [vmem:[%s1421 + $0x30] sm:$0xff]
    %v1429 = vld [vmem:[%s1421 + $0x38] sm:$0xff]
    %s1430 = scalar_lea.vmem %s13, 1
    %v1431 = vld [vmem:[%s1430] sm:$0x1]
    %v1433 = vperm.slane %v1431, 0
    %v1436 = vsel %vm785, %v1419, 0
    %v1439 = vsel %vm785, %v1420, 0
    %1441 = vmatpush.msra.mxu0 0.0
    %1442 = vmatpush.msra.mxu0 0.0
    %1443 = vmatpush.msra.mxu0 0.0
    %1444 = vmatpush.msra.mxu0 0.0
    %1445 = vmatpush.msra.mxu0 0.0
    %1446 = vmatpush.msra.mxu0 0.0
    %1447 = vmatpush.msra.mxu0 0.0
    %1448 = vmatpush.msra.mxu0 0.0
    %1449 = vmatpush.msra.mxu0 %v1429
    %1450 = vmatpush.msra.mxu0 %v1428
    %1451 = vmatpush.msra.mxu0 %v1427
    %1452 = vmatpush.msra.mxu0 %v1426
    %1453 = vmatpush.msra.mxu0 %v1425
    %1454 = vmatpush.msra.mxu0 %v1424
    %1455 = vmatpush.msra.mxu0 %v1423
    %1456 = vmatpush.msra.mxu0 %v1422
    %1457 = vmatmul.f32.gmra.mxu0 %v1436
    %v1458 = vpop.f32.mrf.mxu0
    %v1459 = vadd.f32 %v1433, %v1458
    %1460 = vmatmul.f32.gmra.mxu0 %v1439
    %v1461 = vpop.f32.mrf.mxu0
    %v1462 = vadd.f32 %v1433, %v1461
    %1463 = vdwg.mxu0
    %v1464 = vadd.f32 %v1459, %v1378
    %v1465 = vadd.f32 %v1462, %v1379
    %v1466 = vld [vmem:[%s14] sm:$0xff]
    %v1467 = vld [vmem:[%s14 + $0x8] sm:$0xff]
    %v1468 = vld [vmem:[%s14 + $0x10] sm:$0xff]
    %v1469 = vld [vmem:[%s14 + $0x18] sm:$0xff]
    %v1470 = vld [vmem:[%s15] sm:$0x1]
    %v1472 = vperm.slane %v1470, 0
    %v1475 = vsel %vm166, %v1464, 0
    %v1478 = vsel %vm166, %v1465, 0
    %1480 = vmatpush.msra.mxu0 0.0
    %1481 = vmatpush.msra.mxu0 0.0
    %1482 = vmatpush.msra.mxu0 0.0
    %1483 = vmatpush.msra.mxu0 0.0
    %1484 = vmatpush.msra.mxu0 0.0
    %1485 = vmatpush.msra.mxu0 0.0
    %1486 = vmatpush.msra.mxu0 0.0
    %1487 = vmatpush.msra.mxu0 0.0
    %1488 = vmatpush.msra.mxu0 0.0
    %1489 = vmatpush.msra.mxu0 0.0
    %1490 = vmatpush.msra.mxu0 0.0
    %1491 = vmatpush.msra.mxu0 0.0
    %1492 = vmatpush.msra.mxu0 %v1469
    %1493 = vmatpush.msra.mxu0 %v1468
    %1494 = vmatpush.msra.mxu0 %v1467
    %1495 = vmatpush.msra.mxu0 %v1466
    %1496 = vmatmul.f32.gmra.mxu0 %v1475
    %v1497 = vpop.f32.mrf.mxu0
    %v1498 = vadd.f32 %v1472, %v1497
    %1499 = vmatmul.f32.gmra.mxu0 %v1478
    %v1500 = vpop.f32.mrf.mxu0
    %v1501 = vadd.f32 %v1472, %v1500
    %1502 = vdwg.mxu0
    %1503 = vst [vmem:[#allocation5] sm:$0xff] %v1498
    %1504 = vst [vmem:[#allocation5 + $0x8] sm:$0xff] %v1501
    // Predicated region
    $region62: #{tpu_custom_call.1} parent=1 // pred_check
      _
    $region63: #{tpu_custom_call.1} parent=1 // pred_check_branch
      %1506 = sbr.rel (0) target = $region65
    $region64: #{tpu_custom_call.1} parent=1 // pred_region
      %1508 = vsyncadd [#allocation6], 0
      %s1509 = sshll.u32 [#allocation5], 4
      %s1510 = int_to_ptr.vmem [resolvable:$true] %s1509
      %s1511 = sshll.u32 %s16, 4
      %s1512 = int_to_ptr.hbm [resolvable:$true] %s1511
      %1517 = dma.vmem_to_hbm [thread:$0]  %s1510, 256, %s1512, [#allocation6], 128, 128, 8
    $region65: #{tpu_custom_call.1} parent=1 // pred_fallthru
      _
    // Predicated region
    $region66: #{tpu_custom_call.1} parent=1 // pred_check
      _
    $region67: #{tpu_custom_call.1} parent=1 // pred_check_branch
      %1519 = sbr.rel (0) target = $region69
    $region68: #{tpu_custom_call.1} parent=1 // pred_region
      %1521 = dma.done [#allocation6], 256
    $region69: #{tpu_custom_call.1} parent=1 // pred_fallthru
      _
    %1522 = vsyncpa [#allocation6], 1

</llo_original>
